<compile_context>
chip_gen: v5e
topology: v5e:2x2
jax: 0.10.0
libtpu: 0.0.40
codegen_flags: <defaults>
</compile_context>

<pallas_src>
import jax
import jax.numpy as jnp
from jax import lax
from jax.experimental import pallas as pl
from jax.experimental.pallas import tpu as pltpu

LANE = 128     # f32 lane width
SUBLANE = 8    # f32 sublane width


# ----------------------------------------------------------------------------
# Kernel
# ----------------------------------------------------------------------------
def bilstm_kernel(x_ref,                           # (T, TB, Dp) time-major batch tile
                  wih_f_ref, whh_f_ref, b_f_ref,   # (Dp,4Hp) (Hp,4Hp) (1,4Hp)
                  wih_b_ref, b_b_ref,              # (Dp,3Hp) (1,3Hp)   [i,g,o only]
                  wfc_f_ref, wfc_b_ref, bfc_ref,   # (1,Hp) (1,Hp) (1,1)
                  out_ref,                         # (TB, 1)
                  gx_ref):                         # VMEM scratch (T*TB, 4Hp) f32
    T, TB, Dp = x_ref.shape
    H4 = whh_f_ref.shape[1]
    Hp = H4 // 4
    mxu_dtype = whh_f_ref.dtype                    # bf16 (or f32) for MXU dots

    def _sigmoid(v):
        # sigmoid(x) = 0.5*tanh(0.5*x) + 0.5 : 1 EUP pass instead of exp + recip.
        return 0.5 * jnp.tanh(0.5 * v) + 0.5

    # ---- (1) input projection for ALL timesteps as one big MXU matmul ----
    x_flat = x_ref[...].reshape(T * TB, Dp)        # already mxu_dtype (cast in wrapper)
    gx_ref[...] = (jnp.dot(x_flat, wih_f_ref[...],
                           preferred_element_type=jnp.float32)
                   + b_f_ref[...])                 # bias fused here, off the loop

    whh_f = whh_f_ref[...]                         # stays resident across the loop

    # ---- forward recurrence: only h @ whh_f remains on the serial chain ----
    def fwd_step(t, carry):
        h, c = carry
        row = pl.multiple_of(t * TB, SUBLANE)
        gates = (gx_ref[pl.ds(row, TB), :]
                 + jnp.dot(h.astype(mxu_dtype), whh_f,
                           preferred_element_type=jnp.float32))
        # Hp is a multiple of 128 -> every gate slice is lane-aligned.
        i = _sigmoid(gates[:, 0 * Hp:1 * Hp])
        f = _sigmoid(gates[:, 1 * Hp:2 * Hp])
        g = jnp.tanh(gates[:, 2 * Hp:3 * Hp])
        o = _sigmoid(gates[:, 3 * Hp:4 * Hp])
        c_new = f * c + i * g                      # state math stays f32
        h_new = o * jnp.tanh(c_new)
        return h_new, c_new

    h0 = jnp.zeros((TB, Hp), jnp.float32)
    c0 = jnp.zeros((TB, Hp), jnp.float32)
    h_fwd, _ = lax.fori_loop(0, T, fwd_step, (h0, c0), unroll=min(8, T))

    # ---- (2) backward-direction slot at position T-1: one cell step on
    #      x[T-1] from zero state; h0 @ whh_b == 0 and c0 == 0, so whh_b and the
    #      forget-gate block were never shipped (wih_b/b_b are [i, g, o]). ----
    gates_b = (jnp.dot(x_ref[T - 1], wih_b_ref[...],
                       preferred_element_type=jnp.float32)
               + b_b_ref[...])
    i_b = _sigmoid(gates_b[:, 0 * Hp:1 * Hp])
    g_b = jnp.tanh(gates_b[:, 1 * Hp:2 * Hp])
    o_b = _sigmoid(gates_b[:, 2 * Hp:3 * Hp])
    h_bwd = o_b * jnp.tanh(i_b * g_b)

    # ---- (3) fc + sigmoid: no concat, no N=1 matmul — VPU mul + lane reduce ----
    logits = (jnp.sum(h_fwd * wfc_f_ref[...], axis=-1, keepdims=True)
              + jnp.sum(h_bwd * wfc_b_ref[...], axis=-1, keepdims=True)
              + bfc_ref[...])
    out_ref[...] = _sigmoid(logits)


# ----------------------------------------------------------------------------
# Padding helpers (run once in the wrapper; zero padding is numerically exact)
# ----------------------------------------------------------------------------
def _round_up(n, m):
    return ((n + m - 1) // m) * m


def _pad_axis(a, axis, new):
    pad = [(0, 0)] * a.ndim
    pad[axis] = (0, new - a.shape[axis])
    return jnp.pad(a, pad)


def _select_gate_blocks(w, H, Hp, gates):
    """(..., 4H) -> (..., len(gates)*Hp): keep chosen i/f/g/o blocks, each
    zero-padded to Hp lanes."""
    lead = w.shape[:-1]
    w4 = w.reshape(lead + (4, H))
    w4 = jnp.take(w4, jnp.asarray(gates), axis=-2)
    w4 = jnp.pad(w4, [(0, 0)] * len(lead) + [(0, 0), (0, Hp - H)])
    return w4.reshape(lead + (len(gates) * Hp,))


def _pad_gate_blocks(w, H, Hp):
    return _select_gate_blocks(w, H, Hp, (0, 1, 2, 3))


# ----------------------------------------------------------------------------
# Wrapper
# ----------------------------------------------------------------------------
def bilstm_classifier_forward(x_btd, params, *, mxu_dtype=jnp.bfloat16,
                              batch_tile=None):
    """x_btd: (B, T, D) float32 (PyTorch batch_first layout). Returns (B, 1) f32."""
    B, T, D = x_btd.shape
    H = params["whh_f"].shape[0]

    itm = jnp.dtype(mxu_dtype).itemsize
    sub = SUBLANE * (4 // itm)       # sublane granularity: 8 for f32, 16 for bf16
    Hp = _round_up(H, LANE)          # lane-align every gate block
    Dp = _round_up(D, LANE)          # lane-dense x loads
    Bp = _round_up(B, sub)           # sublane-align the matmul M dimension
    if batch_tile is None:
        # At least 2 batch tiles when the batch allows it, so the "parallel" grid
        # axis actually shards across both TensorCores on v7x; capped at 128 rows.
        batch_tile = min(128, max(sub, _round_up(Bp, 2 * sub) // 2))
    else:
        batch_tile = _round_up(batch_tile, sub)
    Bp = _round_up(Bp, batch_tile)

    # --- layout + padding + dtype (weights would be pre-padded once in a model) ---
    x_tbd = jnp.transpose(x_btd, (1, 0, 2))                  # time-major (T,B,D)
    x_tbd = _pad_axis(_pad_axis(x_tbd, 1, Bp), 2, Dp).astype(mxu_dtype)

    wih_f = _pad_axis(_pad_gate_blocks(params["wih_f"], H, Hp), 0, Dp).astype(mxu_dtype)
    whh_f = _pad_axis(_pad_gate_blocks(params["whh_f"], H, Hp), 0, Hp).astype(mxu_dtype)
    b_f = _pad_gate_blocks(params["b_f"], H, Hp)             # biases stay f32
    # Backward direction is a single step from zero state: whh_b is dead and the
    # forget gate never matters -> only the i/g/o blocks are shipped (3*Hp wide).
    wih_b = _pad_axis(_select_gate_blocks(params["wih_b"], H, Hp, (0, 2, 3)),
                      0, Dp).astype(mxu_dtype)
    b_b = _select_gate_blocks(params["b_b"], H, Hp, (0, 2, 3))
    # fc weight split per direction for the in-kernel multiply-reduce.
    wfc_f = _pad_axis(params["wfc"][:H, 0][None, :], 1, Hp)
    wfc_b = _pad_axis(params["wfc"][H:, 0][None, :], 1, Hp)
    bfc = params["bfc"]

    grid = (Bp // batch_tile,)
    full = lambda b: (0, 0)

    # VMEM budget: x double-buffer + GX slab + weights, clamped to 48 MiB so it
    # stays inside v7x's 64 MiB physical VMEM while sitting well above the
    # 16/32 MiB scoped defaults on v5e/v6e.
    vmem_est = (2 * T * batch_tile * Dp * itm                      # x (2 bufs)
                + T * batch_tile * 4 * Hp * 4                      # gx scratch (f32)
                + 2 * (Dp * 4 * Hp + Hp * 4 * Hp + Dp * 3 * Hp) * itm  # weights
                + 8 * batch_tile * Hp * 4)                         # loop-live temps
    vmem_limit = int(min(max(2 * vmem_est, 32 * 1024 * 1024), 48 * 1024 * 1024))

    out = pl.pallas_call(
        bilstm_kernel,
        out_shape=jax.ShapeDtypeStruct((Bp, 1), jnp.float32),
        grid_spec=pltpu.PrefetchScalarGridSpec(
            num_scalar_prefetch=0,
            grid=grid,
            in_specs=[
                pl.BlockSpec((T, batch_tile, Dp), lambda b: (0, b, 0)),  # x
                pl.BlockSpec((Dp, 4 * Hp), full),                        # wih_f
                pl.BlockSpec((Hp, 4 * Hp), full),                        # whh_f
                pl.BlockSpec((1, 4 * Hp), full),                         # b_f
                pl.BlockSpec((Dp, 3 * Hp), full),                        # wih_b (i,g,o)
                pl.BlockSpec((1, 3 * Hp), full),                         # b_b   (i,g,o)
                pl.BlockSpec((1, Hp), full),                             # wfc_f
                pl.BlockSpec((1, Hp), full),                             # wfc_b
                pl.BlockSpec((1, 1), full),                              # bfc
            ],
            out_specs=pl.BlockSpec((batch_tile, 1), lambda b: (b, 0)),
            scratch_shapes=[pltpu.VMEM((T * batch_tile, 4 * Hp), jnp.float32)],
        ),
        compiler_params=pltpu.CompilerParams(
            dimension_semantics=("parallel",),        # batch tiles -> 2 TCs on v7x
            vmem_limit_bytes=vmem_limit,
        ),
    )(x_tbd, wih_f, whh_f, b_f, wih_b, b_b, wfc_f, wfc_b, bfc)

    return out[:B]


# ----------------------------------------------------------------------------
# Params + pure-JAX reference (PyTorch f32 semantics)
# ----------------------------------------------------------------------------
def init_params(key, input_dim, hidden_dim):
    """nn.LSTM / nn.Linear shapes kept in transposed right-multiply form,
    with the two LSTM biases (b_ih + b_hh) fused."""
    H = hidden_dim
    k = 1.0 / jnp.sqrt(H)
    keys = jax.random.split(key, 10)

    def u(kk, shape):
        return jax.random.uniform(kk, shape, jnp.float32, -k, k)

    return {
        "wih_f": u(keys[0], (input_dim, 4 * H)),
        "whh_f": u(keys[1], (H, 4 * H)),
        "b_f":   u(keys[2], (1, 4 * H)) + u(keys[3], (1, 4 * H)),
        "wih_b": u(keys[4], (input_dim, 4 * H)),
        "whh_b": u(keys[5], (H, 4 * H)),
        "b_b":   u(keys[6], (1, 4 * H)) + u(keys[7], (1, 4 * H)),
        "wfc":   u(keys[8], (2 * H, 1)),
        "bfc":   u(keys[9], (1, 1)),
    }


def reference_forward(x_btd, params):
    """Pure-JAX float32 reference (PyTorch math), for correctness checking."""
    B, T, D = x_btd.shape
    H = params["whh_f"].shape[0]

    def cell(xt, h, c, wih, whh, b):
        g = xt @ wih + h @ whh + b
        i = jax.nn.sigmoid(g[:, 0 * H:1 * H])
        f = jax.nn.sigmoid(g[:, 1 * H:2 * H])
        gg = jnp.tanh(g[:, 2 * H:3 * H])
        o = jax.nn.sigmoid(g[:, 3 * H:4 * H])
        c = f * c + i * gg
        return o * jnp.tanh(c), c

    h = jnp.zeros((B, H), jnp.float32)
    c = jnp.zeros((B, H), jnp.float32)
    for t in range(T):
        h, c = cell(x_btd[:, t, :], h, c,
                    params["wih_f"], params["whh_f"], params["b_f"])
    hb, _ = cell(x_btd[:, -1, :], jnp.zeros((B, H)), jnp.zeros((B, H)),
                 params["wih_b"], params["whh_b"], params["b_b"])
    return jax.nn.sigmoid(jnp.concatenate([h, hb], -1) @ params["wfc"]
                          + params["bfc"])


if __name__ == "__main__":
    B, T, D, H = 4, 8, 16, 32          # batch, seq, input_dim, hidden_dim

    key = jax.random.PRNGKey(0)
    kx, kp = jax.random.split(key)
    x = jax.random.normal(kx, (B, T, D), jnp.float32)
    params = init_params(kp, D, H)

    ref = reference_forward(x, params)

    # f32 MXU path vs PyTorch-style f32 math (tolerance allows for the TPU's
    # default f32-matmul pass decomposition, so the check isn't generation-flaky).
    out_f32 = jax.block_until_ready(
        bilstm_classifier_forward(x, params, mxu_dtype=jnp.float32))
    assert out_f32.shape == (B, 1)
    assert jnp.allclose(out_f32, ref, atol=2e-3, rtol=2e-3), (out_f32, ref)

    # Fast path (bf16 weights/activations into the MXU, f32 accumulate + gates).
    out = jax.block_until_ready(bilstm_classifier_forward(x, params))
    assert out.shape == (B, 1)
    assert jnp.allclose(out, ref, atol=5e-2, rtol=5e-2), (out, ref)

    print("KERNEL_OK")
</pallas_src>

<mosaic_0001>
module attributes {stable_mosaic.version = 11 : i64} {
  func.func @bilstm_kernel(%arg0: i32, %arg1: memref<8x8x128xf32, #tpu.memory_space<vmem>>, %arg2: memref<128x512xf32, #tpu.memory_space<vmem>>, %arg3: memref<128x512xf32, #tpu.memory_space<vmem>>, %arg4: memref<1x512xf32, #tpu.memory_space<vmem>>, %arg5: memref<128x384xf32, #tpu.memory_space<vmem>>, %arg6: memref<1x384xf32, #tpu.memory_space<vmem>>, %arg7: memref<1x128xf32, #tpu.memory_space<vmem>>, %arg8: memref<1x128xf32, #tpu.memory_space<vmem>>, %arg9: memref<1x1xf32, #tpu.memory_space<vmem>>, %arg10: memref<8x1xf32, #tpu.memory_space<vmem>>, %arg11: memref<64x512xf32, #tpu.memory_space<vmem>>) attributes {dimension_semantics = [#tpu.dimension_semantics<parallel>], iteration_bounds = array<i64: 1>, scalar_prefetch = 0 : i64, scratch_operands = 1 : i64, tpu.core_type = #tpu.core_type<tc>, window_params = [{transform_indices = @transform_0, window_bounds = array<i64: 8, 8, 128>}, {pipeline_mode = #tpu.pipeline_mode<synchronous>, transform_indices = @transform_1, window_bounds = array<i64: 128, 512>}, {pipeline_mode = #tpu.pipeline_mode<synchronous>, transform_indices = @transform_2, window_bounds = array<i64: 128, 512>}, {pipeline_mode = #tpu.pipeline_mode<synchronous>, transform_indices = @transform_3, window_bounds = array<i64: 1, 512>}, {pipeline_mode = #tpu.pipeline_mode<synchronous>, transform_indices = @transform_4, window_bounds = array<i64: 128, 384>}, {pipeline_mode = #tpu.pipeline_mode<synchronous>, transform_indices = @transform_5, window_bounds = array<i64: 1, 384>}, {pipeline_mode = #tpu.pipeline_mode<synchronous>, transform_indices = @transform_6, window_bounds = array<i64: 1, 128>}, {pipeline_mode = #tpu.pipeline_mode<synchronous>, transform_indices = @transform_7, window_bounds = array<i64: 1, 128>}, {pipeline_mode = #tpu.pipeline_mode<synchronous>, transform_indices = @transform_8, window_bounds = array<i64: 1, 1>}, {transform_indices = @transform_9, window_bounds = array<i64: 8, 1>}]} {
    %c0 = arith.constant 0 : index
    %c0_0 = arith.constant 0 : index
    %c0_1 = arith.constant 0 : index
    %0 = vector.load %arg1[%c0, %c0_0, %c0_1] : memref<8x8x128xf32, #tpu.memory_space<vmem>>, vector<8x8x128xf32>
    %1 = vector.shape_cast %0 : vector<8x8x128xf32> to vector<64x128xf32>
    %c0_2 = arith.constant 0 : index
    %c0_3 = arith.constant 0 : index
    %2 = vector.load %arg2[%c0_2, %c0_3] : memref<128x512xf32, #tpu.memory_space<vmem>>, vector<128x512xf32>
    %cst = arith.constant dense<0.000000e+00> : vector<64x512xf32>
    %3 = tpu.matmul %1, %2, %cst {dimension_numbers = #tpu.dot_dimension_numbers<[1], [0], [0], [1], [0, 0, 1, 1], [], []>} : vector<64x128xf32>, vector<128x512xf32>, vector<64x512xf32> -> vector<64x512xf32>
    %c0_4 = arith.constant 0 : index
    %c0_5 = arith.constant 0 : index
    %4 = vector.load %arg4[%c0_4, %c0_5] : memref<1x512xf32, #tpu.memory_space<vmem>>, vector<1x512xf32>
    %5 = vector.broadcast %4 : vector<1x512xf32> to vector<64x512xf32>
    %6 = arith.addf %3, %5 : vector<64x512xf32>
    %c0_6 = arith.constant 0 : index
    %c0_7 = arith.constant 0 : index
    %7 = vector.load %arg11[%c0_6, %c0_7] : memref<64x512xf32, #tpu.memory_space<vmem>>, vector<64x512xf32>
    tpu.vector_store %arg11[%c0_6, %c0_7], %6 {strides = array<i32>} : memref<64x512xf32, #tpu.memory_space<vmem>>, vector<64x512xf32>,
    %c0_8 = arith.constant 0 : index
    %c0_9 = arith.constant 0 : index
    %8 = vector.load %arg3[%c0_8, %c0_9] : memref<128x512xf32, #tpu.memory_space<vmem>>, vector<128x512xf32>
    %cst_10 = arith.constant 0.000000e+00 : f32
    %9 = vector.broadcast %cst_10 : f32 to vector<8x128xf32>
    %cst_11 = arith.constant 0.000000e+00 : f32
    %10 = vector.broadcast %cst_11 : f32 to vector<8x128xf32>
    %c0_i32 = arith.constant 0 : i32
    %c8_i32 = arith.constant 8 : i32
    %11 = arith.muli %c0_i32, %c8_i32 : i32
    %12 = tpu.assume_multiple %11, 8 : i32
    %13 = arith.index_cast %12 : i32 to index
    %c0_12 = arith.constant 0 : index
    %14 = vector.load %arg11[%13, %c0_12] : memref<64x512xf32, #tpu.memory_space<vmem>>, vector<8x512xf32>
    %cst_13 = arith.constant dense<0.000000e+00> : vector<8x512xf32>
    %15 = tpu.matmul %9, %8, %cst_13 {dimension_numbers = #tpu.dot_dimension_numbers<[1], [0], [0], [1], [0, 0, 1, 1], [], []>} : vector<8x128xf32>, vector<128x512xf32>, vector<8x512xf32> -> vector<8x512xf32>
    %16 = arith.addf %14, %15 : vector<8x512xf32>
    %17 = vector.extract_strided_slice %16 {offsets = [0, 0], sizes = [8, 128], strides = [1, 1]} : vector<8x512xf32> to vector<8x128xf32>
    %cst_14 = arith.constant 5.000000e-01 : f32
    %18 = vector.broadcast %cst_14 : f32 to vector<8x128xf32>
    %19 = arith.mulf %18, %17 : vector<8x128xf32>
    %20 = math.tanh %19 : vector<8x128xf32>
    %cst_15 = arith.constant 5.000000e-01 : f32
    %21 = vector.broadcast %cst_15 : f32 to vector<8x128xf32>
    %22 = arith.mulf %21, %20 : vector<8x128xf32>
    %cst_16 = arith.constant 5.000000e-01 : f32
    %23 = vector.broadcast %cst_16 : f32 to vector<8x128xf32>
    %24 = arith.addf %22, %23 : vector<8x128xf32>
    %25 = vector.extract_strided_slice %16 {offsets = [0, 128], sizes = [8, 128], strides = [1, 1]} : vector<8x512xf32> to vector<8x128xf32>
    %cst_17 = arith.constant 5.000000e-01 : f32
    %26 = vector.broadcast %cst_17 : f32 to vector<8x128xf32>
    %27 = arith.mulf %26, %25 : vector<8x128xf32>
    %28 = math.tanh %27 : vector<8x128xf32>
    %cst_18 = arith.constant 5.000000e-01 : f32
    %29 = vector.broadcast %cst_18 : f32 to vector<8x128xf32>
    %30 = arith.mulf %29, %28 : vector<8x128xf32>
    %cst_19 = arith.constant 5.000000e-01 : f32
    %31 = vector.broadcast %cst_19 : f32 to vector<8x128xf32>
    %32 = arith.addf %30, %31 : vector<8x128xf32>
    %33 = vector.extract_strided_slice %16 {offsets = [0, 256], sizes = [8, 128], strides = [1, 1]} : vector<8x512xf32> to vector<8x128xf32>
    %34 = math.tanh %33 : vector<8x128xf32>
    %35 = vector.extract_strided_slice %16 {offsets = [0, 384], sizes = [8, 128], strides = [1, 1]} : vector<8x512xf32> to vector<8x128xf32>
    %cst_20 = arith.constant 5.000000e-01 : f32
    %36 = vector.broadcast %cst_20 : f32 to vector<8x128xf32>
    %37 = arith.mulf %36, %35 : vector<8x128xf32>
    %38 = math.tanh %37 : vector<8x128xf32>
    %cst_21 = arith.constant 5.000000e-01 : f32
    %39 = vector.broadcast %cst_21 : f32 to vector<8x128xf32>
    %40 = arith.mulf %39, %38 : vector<8x128xf32>
    %cst_22 = arith.constant 5.000000e-01 : f32
    %41 = vector.broadcast %cst_22 : f32 to vector<8x128xf32>
    %42 = arith.addf %40, %41 : vector<8x128xf32>
    %43 = arith.mulf %32, %10 : vector<8x128xf32>
    %44 = arith.mulf %24, %34 : vector<8x128xf32>
    %45 = arith.addf %43, %44 : vector<8x128xf32>
    %46 = math.tanh %45 : vector<8x128xf32>
    %47 = arith.mulf %42, %46 : vector<8x128xf32>
    %c1_i32 = arith.constant 1 : i32
    %c8_i32_23 = arith.constant 8 : i32
    %48 = arith.muli %c1_i32, %c8_i32_23 : i32
    %49 = tpu.assume_multiple %48, 8 : i32
    %50 = arith.index_cast %49 : i32 to index
    %c0_24 = arith.constant 0 : index
    %51 = vector.load %arg11[%50, %c0_24] : memref<64x512xf32, #tpu.memory_space<vmem>>, vector<8x512xf32>
    %cst_25 = arith.constant dense<0.000000e+00> : vector<8x512xf32>
    %52 = tpu.matmul %47, %8, %cst_25 {dimension_numbers = #tpu.dot_dimension_numbers<[1], [0], [0], [1], [0, 0, 1, 1], [], []>} : vector<8x128xf32>, vector<128x512xf32>, vector<8x512xf32> -> vector<8x512xf32>
    %53 = arith.addf %51, %52 : vector<8x512xf32>
    %54 = vector.extract_strided_slice %53 {offsets = [0, 0], sizes = [8, 128], strides = [1, 1]} : vector<8x512xf32> to vector<8x128xf32>
    %cst_26 = arith.constant 5.000000e-01 : f32
    %55 = vector.broadcast %cst_26 : f32 to vector<8x128xf32>
    %56 = arith.mulf %55, %54 : vector<8x128xf32>
    %57 = math.tanh %56 : vector<8x128xf32>
    %cst_27 = arith.constant 5.000000e-01 : f32
    %58 = vector.broadcast %cst_27 : f32 to vector<8x128xf32>
    %59 = arith.mulf %58, %57 : vector<8x128xf32>
    %cst_28 = arith.constant 5.000000e-01 : f32
    %60 = vector.broadcast %cst_28 : f32 to vector<8x128xf32>
    %61 = arith.addf %59, %60 : vector<8x128xf32>
    %62 = vector.extract_strided_slice %53 {offsets = [0, 128], sizes = [8, 128], strides = [1, 1]} : vector<8x512xf32> to vector<8x128xf32>
    %cst_29 = arith.constant 5.000000e-01 : f32
    %63 = vector.broadcast %cst_29 : f32 to vector<8x128xf32>
    %64 = arith.mulf %63, %62 : vector<8x128xf32>
    %65 = math.tanh %64 : vector<8x128xf32>
    %cst_30 = arith.constant 5.000000e-01 : f32
    %66 = vector.broadcast %cst_30 : f32 to vector<8x128xf32>
    %67 = arith.mulf %66, %65 : vector<8x128xf32>
    %cst_31 = arith.constant 5.000000e-01 : f32
    %68 = vector.broadcast %cst_31 : f32 to vector<8x128xf32>
    %69 = arith.addf %67, %68 : vector<8x128xf32>
    %70 = vector.extract_strided_slice %53 {offsets = [0, 256], sizes = [8, 128], strides = [1, 1]} : vector<8x512xf32> to vector<8x128xf32>
    %71 = math.tanh %70 : vector<8x128xf32>
    %72 = vector.extract_strided_slice %53 {offsets = [0, 384], sizes = [8, 128], strides = [1, 1]} : vector<8x512xf32> to vector<8x128xf32>
    %cst_32 = arith.constant 5.000000e-01 : f32
    %73 = vector.broadcast %cst_32 : f32 to vector<8x128xf32>
    %74 = arith.mulf %73, %72 : vector<8x128xf32>
    %75 = math.tanh %74 : vector<8x128xf32>
    %cst_33 = arith.constant 5.000000e-01 : f32
    %76 = vector.broadcast %cst_33 : f32 to vector<8x128xf32>
    %77 = arith.mulf %76, %75 : vector<8x128xf32>
    %cst_34 = arith.constant 5.000000e-01 : f32
    %78 = vector.broadcast %cst_34 : f32 to vector<8x128xf32>
    %79 = arith.addf %77, %78 : vector<8x128xf32>
    %80 = arith.mulf %69, %45 : vector<8x128xf32>
    %81 = arith.mulf %61, %71 : vector<8x128xf32>
    %82 = arith.addf %80, %81 : vector<8x128xf32>
    %83 = math.tanh %82 : vector<8x128xf32>
    %84 = arith.mulf %79, %83 : vector<8x128xf32>
    %c2_i32 = arith.constant 2 : i32
    %c8_i32_35 = arith.constant 8 : i32
    %85 = arith.muli %c2_i32, %c8_i32_35 : i32
    %86 = tpu.assume_multiple %85, 8 : i32
    %87 = arith.index_cast %86 : i32 to index
    %c0_36 = arith.constant 0 : index
    %88 = vector.load %arg11[%87, %c0_36] : memref<64x512xf32, #tpu.memory_space<vmem>>, vector<8x512xf32>
    %cst_37 = arith.constant dense<0.000000e+00> : vector<8x512xf32>
    %89 = tpu.matmul %84, %8, %cst_37 {dimension_numbers = #tpu.dot_dimension_numbers<[1], [0], [0], [1], [0, 0, 1, 1], [], []>} : vector<8x128xf32>, vector<128x512xf32>, vector<8x512xf32> -> vector<8x512xf32>
    %90 = arith.addf %88, %89 : vector<8x512xf32>
    %91 = vector.extract_strided_slice %90 {offsets = [0, 0], sizes = [8, 128], strides = [1, 1]} : vector<8x512xf32> to vector<8x128xf32>
    %cst_38 = arith.constant 5.000000e-01 : f32
    %92 = vector.broadcast %cst_38 : f32 to vector<8x128xf32>
    %93 = arith.mulf %92, %91 : vector<8x128xf32>
    %94 = math.tanh %93 : vector<8x128xf32>
    %cst_39 = arith.constant 5.000000e-01 : f32
    %95 = vector.broadcast %cst_39 : f32 to vector<8x128xf32>
    %96 = arith.mulf %95, %94 : vector<8x128xf32>
    %cst_40 = arith.constant 5.000000e-01 : f32
    %97 = vector.broadcast %cst_40 : f32 to vector<8x128xf32>
    %98 = arith.addf %96, %97 : vector<8x128xf32>
    %99 = vector.extract_strided_slice %90 {offsets = [0, 128], sizes = [8, 128], strides = [1, 1]} : vector<8x512xf32> to vector<8x128xf32>
    %cst_41 = arith.constant 5.000000e-01 : f32
    %100 = vector.broadcast %cst_41 : f32 to vector<8x128xf32>
    %101 = arith.mulf %100, %99 : vector<8x128xf32>
    %102 = math.tanh %101 : vector<8x128xf32>
    %cst_42 = arith.constant 5.000000e-01 : f32
    %103 = vector.broadcast %cst_42 : f32 to vector<8x128xf32>
    %104 = arith.mulf %103, %102 : vector<8x128xf32>
    %cst_43 = arith.constant 5.000000e-01 : f32
    %105 = vector.broadcast %cst_43 : f32 to vector<8x128xf32>
    %106 = arith.addf %104, %105 : vector<8x128xf32>
    %107 = vector.extract_strided_slice %90 {offsets = [0, 256], sizes = [8, 128], strides = [1, 1]} : vector<8x512xf32> to vector<8x128xf32>
    %108 = math.tanh %107 : vector<8x128xf32>
    %109 = vector.extract_strided_slice %90 {offsets = [0, 384], sizes = [8, 128], strides = [1, 1]} : vector<8x512xf32> to vector<8x128xf32>
    %cst_44 = arith.constant 5.000000e-01 : f32
    %110 = vector.broadcast %cst_44 : f32 to vector<8x128xf32>
    %111 = arith.mulf %110, %109 : vector<8x128xf32>
    %112 = math.tanh %111 : vector<8x128xf32>
    %cst_45 = arith.constant 5.000000e-01 : f32
    %113 = vector.broadcast %cst_45 : f32 to vector<8x128xf32>
    %114 = arith.mulf %113, %112 : vector<8x128xf32>
    %cst_46 = arith.constant 5.000000e-01 : f32
    %115 = vector.broadcast %cst_46 : f32 to vector<8x128xf32>
    %116 = arith.addf %114, %115 : vector<8x128xf32>
    %117 = arith.mulf %106, %82 : vector<8x128xf32>
    %118 = arith.mulf %98, %108 : vector<8x128xf32>
    %119 = arith.addf %117, %118 : vector<8x128xf32>
    %120 = math.tanh %119 : vector<8x128xf32>
    %121 = arith.mulf %116, %120 : vector<8x128xf32>
    %c3_i32 = arith.constant 3 : i32
    %c8_i32_47 = arith.constant 8 : i32
    %122 = arith.muli %c3_i32, %c8_i32_47 : i32
    %123 = tpu.assume_multiple %122, 8 : i32
    %124 = arith.index_cast %123 : i32 to index
    %c0_48 = arith.constant 0 : index
    %125 = vector.load %arg11[%124, %c0_48] : memref<64x512xf32, #tpu.memory_space<vmem>>, vector<8x512xf32>
    %cst_49 = arith.constant dense<0.000000e+00> : vector<8x512xf32>
    %126 = tpu.matmul %121, %8, %cst_49 {dimension_numbers = #tpu.dot_dimension_numbers<[1], [0], [0], [1], [0, 0, 1, 1], [], []>} : vector<8x128xf32>, vector<128x512xf32>, vector<8x512xf32> -> vector<8x512xf32>
    %127 = arith.addf %125, %126 : vector<8x512xf32>
    %128 = vector.extract_strided_slice %127 {offsets = [0, 0], sizes = [8, 128], strides = [1, 1]} : vector<8x512xf32> to vector<8x128xf32>
    %cst_50 = arith.constant 5.000000e-01 : f32
    %129 = vector.broadcast %cst_50 : f32 to vector<8x128xf32>
    %130 = arith.mulf %129, %128 : vector<8x128xf32>
    %131 = math.tanh %130 : vector<8x128xf32>
    %cst_51 = arith.constant 5.000000e-01 : f32
    %132 = vector.broadcast %cst_51 : f32 to vector<8x128xf32>
    %133 = arith.mulf %132, %131 : vector<8x128xf32>
    %cst_52 = arith.constant 5.000000e-01 : f32
    %134 = vector.broadcast %cst_52 : f32 to vector<8x128xf32>
    %135 = arith.addf %133, %134 : vector<8x128xf32>
    %136 = vector.extract_strided_slice %127 {offsets = [0, 128], sizes = [8, 128], strides = [1, 1]} : vector<8x512xf32> to vector<8x128xf32>
    %cst_53 = arith.constant 5.000000e-01 : f32
    %137 = vector.broadcast %cst_53 : f32 to vector<8x128xf32>
    %138 = arith.mulf %137, %136 : vector<8x128xf32>
    %139 = math.tanh %138 : vector<8x128xf32>
    %cst_54 = arith.constant 5.000000e-01 : f32
    %140 = vector.broadcast %cst_54 : f32 to vector<8x128xf32>
    %141 = arith.mulf %140, %139 : vector<8x128xf32>
    %cst_55 = arith.constant 5.000000e-01 : f32
    %142 = vector.broadcast %cst_55 : f32 to vector<8x128xf32>
    %143 = arith.addf %141, %142 : vector<8x128xf32>
    %144 = vector.extract_strided_slice %127 {offsets = [0, 256], sizes = [8, 128], strides = [1, 1]} : vector<8x512xf32> to vector<8x128xf32>
    %145 = math.tanh %144 : vector<8x128xf32>
    %146 = vector.extract_strided_slice %127 {offsets = [0, 384], sizes = [8, 128], strides = [1, 1]} : vector<8x512xf32> to vector<8x128xf32>
    %cst_56 = arith.constant 5.000000e-01 : f32
    %147 = vector.broadcast %cst_56 : f32 to vector<8x128xf32>
    %148 = arith.mulf %147, %146 : vector<8x128xf32>
    %149 = math.tanh %148 : vector<8x128xf32>
    %cst_57 = arith.constant 5.000000e-01 : f32
    %150 = vector.broadcast %cst_57 : f32 to vector<8x128xf32>
    %151 = arith.mulf %150, %149 : vector<8x128xf32>
    %cst_58 = arith.constant 5.000000e-01 : f32
    %152 = vector.broadcast %cst_58 : f32 to vector<8x128xf32>
    %153 = arith.addf %151, %152 : vector<8x128xf32>
    %154 = arith.mulf %143, %119 : vector<8x128xf32>
    %155 = arith.mulf %135, %145 : vector<8x128xf32>
    %156 = arith.addf %154, %155 : vector<8x128xf32>
    %157 = math.tanh %156 : vector<8x128xf32>
    %158 = arith.mulf %153, %157 : vector<8x128xf32>
    %c4_i32 = arith.constant 4 : i32
    %c8_i32_59 = arith.constant 8 : i32
    %159 = arith.muli %c4_i32, %c8_i32_59 : i32
    %160 = tpu.assume_multiple %159, 8 : i32
    %161 = arith.index_cast %160 : i32 to index
    %c0_60 = arith.constant 0 : index
    %162 = vector.load %arg11[%161, %c0_60] : memref<64x512xf32, #tpu.memory_space<vmem>>, vector<8x512xf32>
    %cst_61 = arith.constant dense<0.000000e+00> : vector<8x512xf32>
    %163 = tpu.matmul %158, %8, %cst_61 {dimension_numbers = #tpu.dot_dimension_numbers<[1], [0], [0], [1], [0, 0, 1, 1], [], []>} : vector<8x128xf32>, vector<128x512xf32>, vector<8x512xf32> -> vector<8x512xf32>
    %164 = arith.addf %162, %163 : vector<8x512xf32>
    %165 = vector.extract_strided_slice %164 {offsets = [0, 0], sizes = [8, 128], strides = [1, 1]} : vector<8x512xf32> to vector<8x128xf32>
    %cst_62 = arith.constant 5.000000e-01 : f32
    %166 = vector.broadcast %cst_62 : f32 to vector<8x128xf32>
    %167 = arith.mulf %166, %165 : vector<8x128xf32>
    %168 = math.tanh %167 : vector<8x128xf32>
    %cst_63 = arith.constant 5.000000e-01 : f32
    %169 = vector.broadcast %cst_63 : f32 to vector<8x128xf32>
    %170 = arith.mulf %169, %168 : vector<8x128xf32>
    %cst_64 = arith.constant 5.000000e-01 : f32
    %171 = vector.broadcast %cst_64 : f32 to vector<8x128xf32>
    %172 = arith.addf %170, %171 : vector<8x128xf32>
    %173 = vector.extract_strided_slice %164 {offsets = [0, 128], sizes = [8, 128], strides = [1, 1]} : vector<8x512xf32> to vector<8x128xf32>
    %cst_65 = arith.constant 5.000000e-01 : f32
    %174 = vector.broadcast %cst_65 : f32 to vector<8x128xf32>
    %175 = arith.mulf %174, %173 : vector<8x128xf32>
    %176 = math.tanh %175 : vector<8x128xf32>
    %cst_66 = arith.constant 5.000000e-01 : f32
    %177 = vector.broadcast %cst_66 : f32 to vector<8x128xf32>
    %178 = arith.mulf %177, %176 : vector<8x128xf32>
    %cst_67 = arith.constant 5.000000e-01 : f32
    %179 = vector.broadcast %cst_67 : f32 to vector<8x128xf32>
    %180 = arith.addf %178, %179 : vector<8x128xf32>
    %181 = vector.extract_strided_slice %164 {offsets = [0, 256], sizes = [8, 128], strides = [1, 1]} : vector<8x512xf32> to vector<8x128xf32>
    %182 = math.tanh %181 : vector<8x128xf32>
    %183 = vector.extract_strided_slice %164 {offsets = [0, 384], sizes = [8, 128], strides = [1, 1]} : vector<8x512xf32> to vector<8x128xf32>
    %cst_68 = arith.constant 5.000000e-01 : f32
    %184 = vector.broadcast %cst_68 : f32 to vector<8x128xf32>
    %185 = arith.mulf %184, %183 : vector<8x128xf32>
    %186 = math.tanh %185 : vector<8x128xf32>
    %cst_69 = arith.constant 5.000000e-01 : f32
    %187 = vector.broadcast %cst_69 : f32 to vector<8x128xf32>
    %188 = arith.mulf %187, %186 : vector<8x128xf32>
    %cst_70 = arith.constant 5.000000e-01 : f32
    %189 = vector.broadcast %cst_70 : f32 to vector<8x128xf32>
    %190 = arith.addf %188, %189 : vector<8x128xf32>
    %191 = arith.mulf %180, %156 : vector<8x128xf32>
    %192 = arith.mulf %172, %182 : vector<8x128xf32>
    %193 = arith.addf %191, %192 : vector<8x128xf32>
    %194 = math.tanh %193 : vector<8x128xf32>
    %195 = arith.mulf %190, %194 : vector<8x128xf32>
    %c5_i32 = arith.constant 5 : i32
    %c8_i32_71 = arith.constant 8 : i32
    %196 = arith.muli %c5_i32, %c8_i32_71 : i32
    %197 = tpu.assume_multiple %196, 8 : i32
    %198 = arith.index_cast %197 : i32 to index
    %c0_72 = arith.constant 0 : index
    %199 = vector.load %arg11[%198, %c0_72] : memref<64x512xf32, #tpu.memory_space<vmem>>, vector<8x512xf32>
    %cst_73 = arith.constant dense<0.000000e+00> : vector<8x512xf32>
    %200 = tpu.matmul %195, %8, %cst_73 {dimension_numbers = #tpu.dot_dimension_numbers<[1], [0], [0], [1], [0, 0, 1, 1], [], []>} : vector<8x128xf32>, vector<128x512xf32>, vector<8x512xf32> -> vector<8x512xf32>
    %201 = arith.addf %199, %200 : vector<8x512xf32>
    %202 = vector.extract_strided_slice %201 {offsets = [0, 0], sizes = [8, 128], strides = [1, 1]} : vector<8x512xf32> to vector<8x128xf32>
    %cst_74 = arith.constant 5.000000e-01 : f32
    %203 = vector.broadcast %cst_74 : f32 to vector<8x128xf32>
    %204 = arith.mulf %203, %202 : vector<8x128xf32>
    %205 = math.tanh %204 : vector<8x128xf32>
    %cst_75 = arith.constant 5.000000e-01 : f32
    %206 = vector.broadcast %cst_75 : f32 to vector<8x128xf32>
    %207 = arith.mulf %206, %205 : vector<8x128xf32>
    %cst_76 = arith.constant 5.000000e-01 : f32
    %208 = vector.broadcast %cst_76 : f32 to vector<8x128xf32>
    %209 = arith.addf %207, %208 : vector<8x128xf32>
    %210 = vector.extract_strided_slice %201 {offsets = [0, 128], sizes = [8, 128], strides = [1, 1]} : vector<8x512xf32> to vector<8x128xf32>
    %cst_77 = arith.constant 5.000000e-01 : f32
    %211 = vector.broadcast %cst_77 : f32 to vector<8x128xf32>
    %212 = arith.mulf %211, %210 : vector<8x128xf32>
    %213 = math.tanh %212 : vector<8x128xf32>
    %cst_78 = arith.constant 5.000000e-01 : f32
    %214 = vector.broadcast %cst_78 : f32 to vector<8x128xf32>
    %215 = arith.mulf %214, %213 : vector<8x128xf32>
    %cst_79 = arith.constant 5.000000e-01 : f32
    %216 = vector.broadcast %cst_79 : f32 to vector<8x128xf32>
    %217 = arith.addf %215, %216 : vector<8x128xf32>
    %218 = vector.extract_strided_slice %201 {offsets = [0, 256], sizes = [8, 128], strides = [1, 1]} : vector<8x512xf32> to vector<8x128xf32>
    %219 = math.tanh %218 : vector<8x128xf32>
    %220 = vector.extract_strided_slice %201 {offsets = [0, 384], sizes = [8, 128], strides = [1, 1]} : vector<8x512xf32> to vector<8x128xf32>
    %cst_80 = arith.constant 5.000000e-01 : f32
    %221 = vector.broadcast %cst_80 : f32 to vector<8x128xf32>
    %222 = arith.mulf %221, %220 : vector<8x128xf32>
    %223 = math.tanh %222 : vector<8x128xf32>
    %cst_81 = arith.constant 5.000000e-01 : f32
    %224 = vector.broadcast %cst_81 : f32 to vector<8x128xf32>
    %225 = arith.mulf %224, %223 : vector<8x128xf32>
    %cst_82 = arith.constant 5.000000e-01 : f32
    %226 = vector.broadcast %cst_82 : f32 to vector<8x128xf32>
    %227 = arith.addf %225, %226 : vector<8x128xf32>
    %228 = arith.mulf %217, %193 : vector<8x128xf32>
    %229 = arith.mulf %209, %219 : vector<8x128xf32>
    %230 = arith.addf %228, %229 : vector<8x128xf32>
    %231 = math.tanh %230 : vector<8x128xf32>
    %232 = arith.mulf %227, %231 : vector<8x128xf32>
    %c6_i32 = arith.constant 6 : i32
    %c8_i32_83 = arith.constant 8 : i32
    %233 = arith.muli %c6_i32, %c8_i32_83 : i32
    %234 = tpu.assume_multiple %233, 8 : i32
    %235 = arith.index_cast %234 : i32 to index
    %c0_84 = arith.constant 0 : index
    %236 = vector.load %arg11[%235, %c0_84] : memref<64x512xf32, #tpu.memory_space<vmem>>, vector<8x512xf32>
    %cst_85 = arith.constant dense<0.000000e+00> : vector<8x512xf32>
    %237 = tpu.matmul %232, %8, %cst_85 {dimension_numbers = #tpu.dot_dimension_numbers<[1], [0], [0], [1], [0, 0, 1, 1], [], []>} : vector<8x128xf32>, vector<128x512xf32>, vector<8x512xf32> -> vector<8x512xf32>
    %238 = arith.addf %236, %237 : vector<8x512xf32>
    %239 = vector.extract_strided_slice %238 {offsets = [0, 0], sizes = [8, 128], strides = [1, 1]} : vector<8x512xf32> to vector<8x128xf32>
    %cst_86 = arith.constant 5.000000e-01 : f32
    %240 = vector.broadcast %cst_86 : f32 to vector<8x128xf32>
    %241 = arith.mulf %240, %239 : vector<8x128xf32>
    %242 = math.tanh %241 : vector<8x128xf32>
    %cst_87 = arith.constant 5.000000e-01 : f32
    %243 = vector.broadcast %cst_87 : f32 to vector<8x128xf32>
    %244 = arith.mulf %243, %242 : vector<8x128xf32>
    %cst_88 = arith.constant 5.000000e-01 : f32
    %245 = vector.broadcast %cst_88 : f32 to vector<8x128xf32>
    %246 = arith.addf %244, %245 : vector<8x128xf32>
    %247 = vector.extract_strided_slice %238 {offsets = [0, 128], sizes = [8, 128], strides = [1, 1]} : vector<8x512xf32> to vector<8x128xf32>
    %cst_89 = arith.constant 5.000000e-01 : f32
    %248 = vector.broadcast %cst_89 : f32 to vector<8x128xf32>
    %249 = arith.mulf %248, %247 : vector<8x128xf32>
    %250 = math.tanh %249 : vector<8x128xf32>
    %cst_90 = arith.constant 5.000000e-01 : f32
    %251 = vector.broadcast %cst_90 : f32 to vector<8x128xf32>
    %252 = arith.mulf %251, %250 : vector<8x128xf32>
    %cst_91 = arith.constant 5.000000e-01 : f32
    %253 = vector.broadcast %cst_91 : f32 to vector<8x128xf32>
    %254 = arith.addf %252, %253 : vector<8x128xf32>
    %255 = vector.extract_strided_slice %238 {offsets = [0, 256], sizes = [8, 128], strides = [1, 1]} : vector<8x512xf32> to vector<8x128xf32>
    %256 = math.tanh %255 : vector<8x128xf32>
    %257 = vector.extract_strided_slice %238 {offsets = [0, 384], sizes = [8, 128], strides = [1, 1]} : vector<8x512xf32> to vector<8x128xf32>
    %cst_92 = arith.constant 5.000000e-01 : f32
    %258 = vector.broadcast %cst_92 : f32 to vector<8x128xf32>
    %259 = arith.mulf %258, %257 : vector<8x128xf32>
    %260 = math.tanh %259 : vector<8x128xf32>
    %cst_93 = arith.constant 5.000000e-01 : f32
    %261 = vector.broadcast %cst_93 : f32 to vector<8x128xf32>
    %262 = arith.mulf %261, %260 : vector<8x128xf32>
    %cst_94 = arith.constant 5.000000e-01 : f32
    %263 = vector.broadcast %cst_94 : f32 to vector<8x128xf32>
    %264 = arith.addf %262, %263 : vector<8x128xf32>
    %265 = arith.mulf %254, %230 : vector<8x128xf32>
    %266 = arith.mulf %246, %256 : vector<8x128xf32>
    %267 = arith.addf %265, %266 : vector<8x128xf32>
    %268 = math.tanh %267 : vector<8x128xf32>
    %269 = arith.mulf %264, %268 : vector<8x128xf32>
    %c7_i32 = arith.constant 7 : i32
    %c8_i32_95 = arith.constant 8 : i32
    %270 = arith.muli %c7_i32, %c8_i32_95 : i32
    %271 = tpu.assume_multiple %270, 8 : i32
    %272 = arith.index_cast %271 : i32 to index
    %c0_96 = arith.constant 0 : index
    %273 = vector.load %arg11[%272, %c0_96] : memref<64x512xf32, #tpu.memory_space<vmem>>, vector<8x512xf32>
    %cst_97 = arith.constant dense<0.000000e+00> : vector<8x512xf32>
    %274 = tpu.matmul %269, %8, %cst_97 {dimension_numbers = #tpu.dot_dimension_numbers<[1], [0], [0], [1], [0, 0, 1, 1], [], []>} : vector<8x128xf32>, vector<128x512xf32>, vector<8x512xf32> -> vector<8x512xf32>
    %275 = arith.addf %273, %274 : vector<8x512xf32>
    %276 = vector.extract_strided_slice %275 {offsets = [0, 0], sizes = [8, 128], strides = [1, 1]} : vector<8x512xf32> to vector<8x128xf32>
    %cst_98 = arith.constant 5.000000e-01 : f32
    %277 = vector.broadcast %cst_98 : f32 to vector<8x128xf32>
    %278 = arith.mulf %277, %276 : vector<8x128xf32>
    %279 = math.tanh %278 : vector<8x128xf32>
    %cst_99 = arith.constant 5.000000e-01 : f32
    %280 = vector.broadcast %cst_99 : f32 to vector<8x128xf32>
    %281 = arith.mulf %280, %279 : vector<8x128xf32>
    %cst_100 = arith.constant 5.000000e-01 : f32
    %282 = vector.broadcast %cst_100 : f32 to vector<8x128xf32>
    %283 = arith.addf %281, %282 : vector<8x128xf32>
    %284 = vector.extract_strided_slice %275 {offsets = [0, 128], sizes = [8, 128], strides = [1, 1]} : vector<8x512xf32> to vector<8x128xf32>
    %cst_101 = arith.constant 5.000000e-01 : f32
    %285 = vector.broadcast %cst_101 : f32 to vector<8x128xf32>
    %286 = arith.mulf %285, %284 : vector<8x128xf32>
    %287 = math.tanh %286 : vector<8x128xf32>
    %cst_102 = arith.constant 5.000000e-01 : f32
    %288 = vector.broadcast %cst_102 : f32 to vector<8x128xf32>
    %289 = arith.mulf %288, %287 : vector<8x128xf32>
    %cst_103 = arith.constant 5.000000e-01 : f32
    %290 = vector.broadcast %cst_103 : f32 to vector<8x128xf32>
    %291 = arith.addf %289, %290 : vector<8x128xf32>
    %292 = vector.extract_strided_slice %275 {offsets = [0, 256], sizes = [8, 128], strides = [1, 1]} : vector<8x512xf32> to vector<8x128xf32>
    %293 = math.tanh %292 : vector<8x128xf32>
    %294 = vector.extract_strided_slice %275 {offsets = [0, 384], sizes = [8, 128], strides = [1, 1]} : vector<8x512xf32> to vector<8x128xf32>
    %cst_104 = arith.constant 5.000000e-01 : f32
    %295 = vector.broadcast %cst_104 : f32 to vector<8x128xf32>
    %296 = arith.mulf %295, %294 : vector<8x128xf32>
    %297 = math.tanh %296 : vector<8x128xf32>
    %cst_105 = arith.constant 5.000000e-01 : f32
    %298 = vector.broadcast %cst_105 : f32 to vector<8x128xf32>
    %299 = arith.mulf %298, %297 : vector<8x128xf32>
    %cst_106 = arith.constant 5.000000e-01 : f32
    %300 = vector.broadcast %cst_106 : f32 to vector<8x128xf32>
    %301 = arith.addf %299, %300 : vector<8x128xf32>
    %302 = arith.mulf %291, %267 : vector<8x128xf32>
    %303 = arith.mulf %283, %293 : vector<8x128xf32>
    %304 = arith.addf %302, %303 : vector<8x128xf32>
    %305 = math.tanh %304 : vector<8x128xf32>
    %306 = arith.mulf %301, %305 : vector<8x128xf32>
    %c8_i32_107 = arith.constant 8 : i32
    %c7 = arith.constant 7 : index
    %c0_108 = arith.constant 0 : index
    %c0_109 = arith.constant 0 : index
    %307 = vector.load %arg1[%c7, %c0_108, %c0_109] : memref<8x8x128xf32, #tpu.memory_space<vmem>>, vector<1x8x128xf32>
    %308 = vector.shape_cast %307 : vector<1x8x128xf32> to vector<8x128xf32>
    %c0_110 = arith.constant 0 : index
    %c0_111 = arith.constant 0 : index
    %309 = vector.load %arg5[%c0_110, %c0_111] : memref<128x384xf32, #tpu.memory_space<vmem>>, vector<128x384xf32>
    %cst_112 = arith.constant dense<0.000000e+00> : vector<8x384xf32>
    %310 = tpu.matmul %308, %309, %cst_112 {dimension_numbers = #tpu.dot_dimension_numbers<[1], [0], [0], [1], [0, 0, 1, 1], [], []>} : vector<8x128xf32>, vector<128x384xf32>, vector<8x384xf32> -> vector<8x384xf32>
    %c0_113 = arith.constant 0 : index
    %c0_114 = arith.constant 0 : index
    %311 = vector.load %arg6[%c0_113, %c0_114] : memref<1x384xf32, #tpu.memory_space<vmem>>, vector<1x384xf32>
    %312 = vector.broadcast %311 : vector<1x384xf32> to vector<8x384xf32>
    %313 = arith.addf %310, %312 : vector<8x384xf32>
    %314 = vector.extract_strided_slice %313 {offsets = [0, 0], sizes = [8, 128], strides = [1, 1]} : vector<8x384xf32> to vector<8x128xf32>
    %cst_115 = arith.constant 5.000000e-01 : f32
    %315 = vector.broadcast %cst_115 : f32 to vector<8x128xf32>
    %316 = arith.mulf %315, %314 : vector<8x128xf32>
    %317 = math.tanh %316 : vector<8x128xf32>
    %cst_116 = arith.constant 5.000000e-01 : f32
    %318 = vector.broadcast %cst_116 : f32 to vector<8x128xf32>
    %319 = arith.mulf %318, %317 : vector<8x128xf32>
    %cst_117 = arith.constant 5.000000e-01 : f32
    %320 = vector.broadcast %cst_117 : f32 to vector<8x128xf32>
    %321 = arith.addf %319, %320 : vector<8x128xf32>
    %322 = vector.extract_strided_slice %313 {offsets = [0, 128], sizes = [8, 128], strides = [1, 1]} : vector<8x384xf32> to vector<8x128xf32>
    %323 = math.tanh %322 : vector<8x128xf32>
    %324 = vector.extract_strided_slice %313 {offsets = [0, 256], sizes = [8, 128], strides = [1, 1]} : vector<8x384xf32> to vector<8x128xf32>
    %cst_118 = arith.constant 5.000000e-01 : f32
    %325 = vector.broadcast %cst_118 : f32 to vector<8x128xf32>
    %326 = arith.mulf %325, %324 : vector<8x128xf32>
    %327 = math.tanh %326 : vector<8x128xf32>
    %cst_119 = arith.constant 5.000000e-01 : f32
    %328 = vector.broadcast %cst_119 : f32 to vector<8x128xf32>
    %329 = arith.mulf %328, %327 : vector<8x128xf32>
    %cst_120 = arith.constant 5.000000e-01 : f32
    %330 = vector.broadcast %cst_120 : f32 to vector<8x128xf32>
    %331 = arith.addf %329, %330 : vector<8x128xf32>
    %332 = arith.mulf %321, %323 : vector<8x128xf32>
    %333 = math.tanh %332 : vector<8x128xf32>
    %334 = arith.mulf %331, %333 : vector<8x128xf32>
    %c0_121 = arith.constant 0 : index
    %c0_122 = arith.constant 0 : index
    %335 = vector.load %arg7[%c0_121, %c0_122] : memref<1x128xf32, #tpu.memory_space<vmem>>, vector<1x128xf32>
    %336 = vector.broadcast %335 : vector<1x128xf32> to vector<8x128xf32>
    %337 = arith.mulf %306, %336 : vector<8x128xf32>
    %cst_123 = arith.constant dense<0.000000e+00> : vector<8xf32>
    %338 = vector.multi_reduction <add>, %337, %cst_123 [1] : vector<8x128xf32> to vector<8xf32>
    %339 = vector.shape_cast %338 : vector<8xf32> to vector<8x1xf32>
    %c0_124 = arith.constant 0 : index
    %c0_125 = arith.constant 0 : index
    %340 = vector.load %arg8[%c0_124, %c0_125] : memref<1x128xf32, #tpu.memory_space<vmem>>, vector<1x128xf32>
    %341 = vector.broadcast %340 : vector<1x128xf32> to vector<8x128xf32>
    %342 = arith.mulf %334, %341 : vector<8x128xf32>
    %cst_126 = arith.constant dense<0.000000e+00> : vector<8xf32>
    %343 = vector.multi_reduction <add>, %342, %cst_126 [1] : vector<8x128xf32> to vector<8xf32>
    %344 = vector.shape_cast %343 : vector<8xf32> to vector<8x1xf32>
    %345 = arith.addf %339, %344 : vector<8x1xf32>
    %c0_127 = arith.constant 0 : index
    %c0_128 = arith.constant 0 : index
    %346 = vector.load %arg9[%c0_127, %c0_128] : memref<1x1xf32, #tpu.memory_space<vmem>>, vector<1x1xf32>
    %347 = vector.broadcast %346 : vector<1x1xf32> to vector<8x1xf32>
    %348 = arith.addf %345, %347 : vector<8x1xf32>
    %cst_129 = arith.constant 5.000000e-01 : f32
    %349 = vector.broadcast %cst_129 : f32 to vector<8x1xf32>
    %350 = arith.mulf %349, %348 : vector<8x1xf32>
    %351 = math.tanh %350 : vector<8x1xf32>
    %cst_130 = arith.constant 5.000000e-01 : f32
    %352 = vector.broadcast %cst_130 : f32 to vector<8x1xf32>
    %353 = arith.mulf %352, %351 : vector<8x1xf32>
    %cst_131 = arith.constant 5.000000e-01 : f32
    %354 = vector.broadcast %cst_131 : f32 to vector<8x1xf32>
    %355 = arith.addf %353, %354 : vector<8x1xf32>
    %c0_132 = arith.constant 0 : index
    %c0_133 = arith.constant 0 : index
    %356 = vector.load %arg10[%c0_132, %c0_133] : memref<8x1xf32, #tpu.memory_space<vmem>>, vector<8x1xf32>
    tpu.vector_store %arg10[%c0_132, %c0_133], %355 {strides = array<i32>} : memref<8x1xf32, #tpu.memory_space<vmem>>, vector<8x1xf32>,
    return
  }
  func.func @transform_0(%arg0: i32) -> (i32, i32, i32) {
    %c0_i32 = arith.constant 0 : i32
    %c0_i32_0 = arith.constant 0 : i32
    %c0_i32_1 = arith.constant 0 : i32
    return %c0_i32, %arg0, %c0_i32_0 : i32, i32, i32
  }
  func.func @transform_1(%arg0: i32) -> (i32, i32) {
    %c0_i32 = arith.constant 0 : i32
    %c0_i32_0 = arith.constant 0 : i32
    %c0_i32_1 = arith.constant 0 : i32
    return %c0_i32, %c0_i32_0 : i32, i32
  }
  func.func @transform_2(%arg0: i32) -> (i32, i32) {
    %c0_i32 = arith.constant 0 : i32
    %c0_i32_0 = arith.constant 0 : i32
    %c0_i32_1 = arith.constant 0 : i32
    return %c0_i32, %c0_i32_0 : i32, i32
  }
  func.func @transform_3(%arg0: i32) -> (i32, i32) {
    %c0_i32 = arith.constant 0 : i32
    %c0_i32_0 = arith.constant 0 : i32
    %c0_i32_1 = arith.constant 0 : i32
    return %c0_i32, %c0_i32_0 : i32, i32
  }
  func.func @transform_4(%arg0: i32) -> (i32, i32) {
    %c0_i32 = arith.constant 0 : i32
    %c0_i32_0 = arith.constant 0 : i32
    %c0_i32_1 = arith.constant 0 : i32
    return %c0_i32, %c0_i32_0 : i32, i32
  }
  func.func @transform_5(%arg0: i32) -> (i32, i32) {
    %c0_i32 = arith.constant 0 : i32
    %c0_i32_0 = arith.constant 0 : i32
    %c0_i32_1 = arith.constant 0 : i32
    return %c0_i32, %c0_i32_0 : i32, i32
  }
  func.func @transform_6(%arg0: i32) -> (i32, i32) {
    %c0_i32 = arith.constant 0 : i32
    %c0_i32_0 = arith.constant 0 : i32
    %c0_i32_1 = arith.constant 0 : i32
    return %c0_i32, %c0_i32_0 : i32, i32
  }
  func.func @transform_7(%arg0: i32) -> (i32, i32) {
    %c0_i32 = arith.constant 0 : i32
    %c0_i32_0 = arith.constant 0 : i32
    %c0_i32_1 = arith.constant 0 : i32
    return %c0_i32, %c0_i32_0 : i32, i32
  }
  func.func @transform_8(%arg0: i32) -> (i32, i32) {
    %c0_i32 = arith.constant 0 : i32
    %c0_i32_0 = arith.constant 0 : i32
    %c0_i32_1 = arith.constant 0 : i32
    return %c0_i32, %c0_i32_0 : i32, i32
  }
  func.func @transform_9(%arg0: i32) -> (i32, i32) {
    %c0_i32 = arith.constant 0 : i32
    %c0_i32_0 = arith.constant 0 : i32
    return %arg0, %c0_i32 : i32, i32
  }
}

</mosaic_0001>

<llo_original>
// kernel: tpu_custom_call.1
$region0: #{tpu_custom_call.1}
  #allocation0 [shape = 'u32[]', space=smem, size = 0x4, offset = 0x4, fixed_abs, tag = 'smem constant byte address 0x4 - core index']
  #allocation1 [shape = 'u32[72,128]{1,0:T(1,128)}', space=vmem, size = 0x9000, scoped, tag = 'internal scratch']
  #allocation2 [shape = 'f32[64,512]{1,0:T(8,128)}', space=vmem, size = 0x20000, scoped, tag = 'scratch operand']
  #allocation3 [shape = 'f32[1,1]{1,0:T(1,128)S(1)}', space=vmem, size = 0x200, scoped, tag = 'scoped memory for tpu_custom_call.1']
  %s0 = inlined_call_operand.hbm [shape: f32[8,8,128], index: 0, kind: input, shape index: {}]
  %s1 = inlined_call_operand.hbm [shape: f32[128,512], index: 1, kind: input, shape index: {}]
  %s2 = inlined_call_operand.hbm [shape: f32[128,512], index: 2, kind: input, shape index: {}]
  %s3 = inlined_call_operand.vmem [shape: f32[1,512], index: 3, kind: input, shape index: {}]
  %s4 = inlined_call_operand.hbm [shape: f32[128,384], index: 4, kind: input, shape index: {}]
  %s5 = inlined_call_operand.hbm [shape: f32[1,384], index: 5, kind: input, shape index: {}]
  %s6 = inlined_call_operand.vmem [shape: f32[1,128], index: 6, kind: input, shape index: {}]
  %s7 = inlined_call_operand.vmem [shape: f32[1,128], index: 7, kind: input, shape index: {}]
  %s8 = inlined_call_operand.<no memory space> [shape: f32[1,1], index: 8, kind: input, shape index: {}]
  %s9 = inlined_call_operand.vmem [shape: f32[8,1], index: 9, kind: output, shape index: {}]
  %s10 = sld [smem:[#allocation0]]
  $region66: #{tpu_custom_call.1} parent=0
    _
  %s12 = ssub.s32 1, %s10
  %s13 = scalar_select 0, %s12, %s10
  %v14 = vstv %s8
  %15 = vst [vmem:[#allocation3] sm:$0x1] %v14
  $region1: #{tpu_custom_call.1} parent=0
    #allocation4 [shape = 'u8[32768]{0}', space=vmem, size = 0x8000, scoped, tag = 'input window, operand 0, single buffered']
    #allocation5 [shape = 's32[1]{0}', space=sflag, size = 0x4, scoped, tag = 'scoped memory for tpu_custom_call.1']
    #allocation6 [shape = 'u8[262144]{0}', space=vmem, size = 0x40000, scoped, tag = 'input window, operand 1, single buffered']
    #allocation7 [shape = 's32[1]{0}', space=sflag, size = 0x4, scoped, tag = 'scoped memory for tpu_custom_call.1']
    #allocation8 [shape = 'u8[262144]{0}', space=vmem, size = 0x40000, scoped, tag = 'input window, operand 2, single buffered']
    #allocation9 [shape = 'u8[196608]{0}', space=vmem, size = 0x30000, scoped, tag = 'input window, operand 4, single buffered']
    #allocation10 [shape = 's32[1]{0}', space=sflag, size = 0x4, scoped, tag = 'scoped memory for tpu_custom_call.1']
    #allocation11 [shape = 'u8[1536]{0}', space=vmem, size = 0x800, scoped, tag = 'input window, operand 5, single buffered']
    %16 = vsyncpa [#allocation5], 0
    %17 = vsyncpa [#allocation7], 0
    %18 = vsyncpa [#allocation10], 0
    // Predicated region
    $region2: #{tpu_custom_call.1} parent=1 // pred_check
      _
    $region3: #{tpu_custom_call.1} parent=1 // pred_check_branch
      %20 = sbr.rel (0) target = $region5
    $region4: #{tpu_custom_call.1} parent=1 // pred_region
      %22 = vsyncadd [#allocation5], 0
      %s23 = sshll.u32 %s0, 4
      %s24 = int_to_ptr.hbm [resolvable:$true] %s23
      %s25 = sshll.u32 [#allocation4], 4
      %s26 = int_to_ptr.vmem [resolvable:$true] %s25
      %31 = dma.hbm_to_vmem [thread:$0]  %s24, 1024, %s26, [#allocation5], 128, 128, 8
    $region5: #{tpu_custom_call.1} parent=1 // pred_fallthru
      _
    // Predicated region
    $region6: #{tpu_custom_call.1} parent=1 // pred_check
      _
    $region7: #{tpu_custom_call.1} parent=1 // pred_check_branch
      %33 = sbr.rel (0) target = $region9
    $region8: #{tpu_custom_call.1} parent=1 // pred_region
      %35 = vsyncadd [#allocation7], 0
      %s36 = sshll.u32 %s1, 4
      %s37 = int_to_ptr.hbm [resolvable:$true] %s36
      %s38 = sshll.u32 [#allocation6], 4
      %s39 = int_to_ptr.vmem [resolvable:$true] %s38
      %44 = dma.hbm_to_vmem [thread:$0]  %s37, 8192, %s39, [#allocation7], 512, 512, 32
    $region9: #{tpu_custom_call.1} parent=1 // pred_fallthru
      _
    // Predicated region
    $region10: #{tpu_custom_call.1} parent=1 // pred_check
      _
    $region11: #{tpu_custom_call.1} parent=1 // pred_check_branch
      %46 = sbr.rel (0) target = $region13
    $region12: #{tpu_custom_call.1} parent=1 // pred_region
      %48 = vsyncadd [#allocation7], 0
      %s49 = sshll.u32 %s2, 4
      %s50 = int_to_ptr.hbm [resolvable:$true] %s49
      %s51 = sshll.u32 [#allocation8], 4
      %s52 = int_to_ptr.vmem [resolvable:$true] %s51
      %57 = dma.hbm_to_vmem [thread:$0]  %s50, 8192, %s52, [#allocation7], 512, 512, 32
    $region13: #{tpu_custom_call.1} parent=1 // pred_fallthru
      _
    // Predicated region
    $region14: #{tpu_custom_call.1} parent=1 // pred_check
      _
    $region15: #{tpu_custom_call.1} parent=1 // pred_check_branch
      %59 = sbr.rel (0) target = $region17
    $region16: #{tpu_custom_call.1} parent=1 // pred_region
      _
    $region17: #{tpu_custom_call.1} parent=1 // pred_fallthru
      _
    // Predicated region
    $region18: #{tpu_custom_call.1} parent=1 // pred_check
      _
    $region19: #{tpu_custom_call.1} parent=1 // pred_check_branch
      %61 = sbr.rel (0) target = $region21
    $region20: #{tpu_custom_call.1} parent=1 // pred_region
      %63 = vsyncadd [#allocation10], 0
      %s64 = sshll.u32 %s4, 4
      %s65 = int_to_ptr.hbm [resolvable:$true] %s64
      %s66 = sshll.u32 [#allocation9], 4
      %s67 = int_to_ptr.vmem [resolvable:$true] %s66
      %72 = dma.hbm_to_vmem [thread:$0]  %s65, 6144, %s67, [#allocation10], 384, 384, 24
    $region21: #{tpu_custom_call.1} parent=1 // pred_fallthru
      _
    // Predicated region
    $region22: #{tpu_custom_call.1} parent=1 // pred_check
      _
    $region23: #{tpu_custom_call.1} parent=1 // pred_check_branch
      %74 = sbr.rel (0) target = $region25
    $region24: #{tpu_custom_call.1} parent=1 // pred_region
      %76 = vsyncadd [#allocation10], 0
      %s78 = sshll.u32 %s5, 4
      %s79 = int_to_ptr.hbm [resolvable:$true] %s78
      %s80 = sshll.u32 [#allocation11], 4
      %s81 = int_to_ptr.vmem [resolvable:$true] %s80
      %83 = dma.hbm_to_vmem [thread:$0]  %s79, 48, %s81, [#allocation10]
    $region25: #{tpu_custom_call.1} parent=1 // pred_fallthru
      _
    // Predicated region
    $region26: #{tpu_custom_call.1} parent=1 // pred_check
      _
    $region27: #{tpu_custom_call.1} parent=1 // pred_check_branch
      %85 = sbr.rel (0) target = $region29
    $region28: #{tpu_custom_call.1} parent=1 // pred_region
      _
    $region29: #{tpu_custom_call.1} parent=1 // pred_fallthru
      _
    // Predicated region
    $region30: #{tpu_custom_call.1} parent=1 // pred_check
      _
    $region31: #{tpu_custom_call.1} parent=1 // pred_check_branch
      %87 = sbr.rel (0) target = $region33
    $region32: #{tpu_custom_call.1} parent=1 // pred_region
      _
    $region33: #{tpu_custom_call.1} parent=1 // pred_fallthru
      _
    // Predicated region
    $region34: #{tpu_custom_call.1} parent=1 // pred_check
      _
    $region35: #{tpu_custom_call.1} parent=1 // pred_check_branch
      %89 = sbr.rel (0) target = $region37
    $region36: #{tpu_custom_call.1} parent=1 // pred_region
      _
    $region37: #{tpu_custom_call.1} parent=1 // pred_fallthru
      _
    // Predicated region
    $region38: #{tpu_custom_call.1} parent=1 // pred_check
      _
    $region39: #{tpu_custom_call.1} parent=1 // pred_check_branch
      %91 = sbr.rel (0) target = $region41
    $region40: #{tpu_custom_call.1} parent=1 // pred_region
      %93 = dma.done [#allocation5], 1024
    $region41: #{tpu_custom_call.1} parent=1 // pred_fallthru
      _
    // Predicated region
    $region42: #{tpu_custom_call.1} parent=1 // pred_check
      _
    $region43: #{tpu_custom_call.1} parent=1 // pred_check_branch
      %95 = sbr.rel (0) target = $region45
    $region44: #{tpu_custom_call.1} parent=1 // pred_region
      %97 = dma.done [#allocation7], 8192
    $region45: #{tpu_custom_call.1} parent=1 // pred_fallthru
      _
    // Predicated region
    $region46: #{tpu_custom_call.1} parent=1 // pred_check
      _
    $region47: #{tpu_custom_call.1} parent=1 // pred_check_branch
      %99 = sbr.rel (0) target = $region49
    $region48: #{tpu_custom_call.1} parent=1 // pred_region
      %101 = dma.done [#allocation7], 8192
    $region49: #{tpu_custom_call.1} parent=1 // pred_fallthru
      _
    // Predicated region
    $region50: #{tpu_custom_call.1} parent=1 // pred_check
      _
    $region51: #{tpu_custom_call.1} parent=1 // pred_check_branch
      %103 = sbr.rel (0) target = $region53
    $region52: #{tpu_custom_call.1} parent=1 // pred_region
      %105 = dma.done [#allocation10], 6144
    $region53: #{tpu_custom_call.1} parent=1 // pred_fallthru
      _
    // Predicated region
    $region54: #{tpu_custom_call.1} parent=1 // pred_check
      _
    $region55: #{tpu_custom_call.1} parent=1 // pred_check_branch
      %107 = sbr.rel (0) target = $region57
    $region56: #{tpu_custom_call.1} parent=1 // pred_region
      %109 = dma.done [#allocation10], 48
    $region57: #{tpu_custom_call.1} parent=1 // pred_fallthru
      _
    %v110 = vld [vmem:[#allocation4] sm:$0xff]
    %v111 = vld [vmem:[#allocation4 + $0x8] sm:$0xff]
    %v112 = vld [vmem:[#allocation4 + $0x10] sm:$0xff]
    %v113 = vld [vmem:[#allocation4 + $0x18] sm:$0xff]
    %v114 = vld [vmem:[#allocation4 + $0x20] sm:$0xff]
    %v115 = vld [vmem:[#allocation4 + $0x28] sm:$0xff]
    %v116 = vld [vmem:[#allocation4 + $0x30] sm:$0xff]
    %v117 = vld [vmem:[#allocation4 + $0x38] sm:$0xff]
    %v118 = vld [vmem:[#allocation6] sm:$0xff]
    %v119 = vld [vmem:[#allocation6 + $0x8] sm:$0xff]
    %v120 = vld [vmem:[#allocation6 + $0x10] sm:$0xff]
    %v121 = vld [vmem:[#allocation6 + $0x18] sm:$0xff]
    %v122 = vld [vmem:[#allocation6 + $0x20] sm:$0xff]
    %v123 = vld [vmem:[#allocation6 + $0x28] sm:$0xff]
    %v124 = vld [vmem:[#allocation6 + $0x30] sm:$0xff]
    %v125 = vld [vmem:[#allocation6 + $0x38] sm:$0xff]
    %v126 = vld [vmem:[#allocation6 + $0x40] sm:$0xff]
    %v127 = vld [vmem:[#allocation6 + $0x48] sm:$0xff]
    %v128 = vld [vmem:[#allocation6 + $0x50] sm:$0xff]
    %v129 = vld [vmem:[#allocation6 + $0x58] sm:$0xff]
    %v130 = vld [vmem:[#allocation6 + $0x60] sm:$0xff]
    %v131 = vld [vmem:[#allocation6 + $0x68] sm:$0xff]
    %v132 = vld [vmem:[#allocation6 + $0x70] sm:$0xff]
    %v133 = vld [vmem:[#allocation6 + $0x78] sm:$0xff]
    %v134 = vld [vmem:[#allocation6 + $0x80] sm:$0xff]
    %v135 = vld [vmem:[#allocation6 + $0x88] sm:$0xff]
    %v136 = vld [vmem:[#allocation6 + $0x90] sm:$0xff]
    %v137 = vld [vmem:[#allocation6 + $0x98] sm:$0xff]
    %v138 = vld [vmem:[#allocation6 + $0xa0] sm:$0xff]
    %v139 = vld [vmem:[#allocation6 + $0xa8] sm:$0xff]
    %v140 = vld [vmem:[#allocation6 + $0xb0] sm:$0xff]
    %v141 = vld [vmem:[#allocation6 + $0xb8] sm:$0xff]
    %v142 = vld [vmem:[#allocation6 + $0xc0] sm:$0xff]
    %v143 = vld [vmem:[#allocation6 + $0xc8] sm:$0xff]
    %v144 = vld [vmem:[#allocation6 + $0xd0] sm:$0xff]
    %v145 = vld [vmem:[#allocation6 + $0xd8] sm:$0xff]
    %v146 = vld [vmem:[#allocation6 + $0xe0] sm:$0xff]
    %v147 = vld [vmem:[#allocation6 + $0xe8] sm:$0xff]
    %v148 = vld [vmem:[#allocation6 + $0xf0] sm:$0xff]
    %v149 = vld [vmem:[#allocation6 + $0xf8] sm:$0xff]
    %v150 = vld [vmem:[#allocation6 + $0x100] sm:$0xff]
    %v151 = vld [vmem:[#allocation6 + $0x108] sm:$0xff]
    %v152 = vld [vmem:[#allocation6 + $0x110] sm:$0xff]
    %v153 = vld [vmem:[#allocation6 + $0x118] sm:$0xff]
    %v154 = vld [vmem:[#allocation6 + $0x120] sm:$0xff]
    %v155 = vld [vmem:[#allocation6 + $0x128] sm:$0xff]
    %v156 = vld [vmem:[#allocation6 + $0x130] sm:$0xff]
    %v157 = vld [vmem:[#allocation6 + $0x138] sm:$0xff]
    %v158 = vld [vmem:[#allocation6 + $0x140] sm:$0xff]
    %v159 = vld [vmem:[#allocation6 + $0x148] sm:$0xff]
    %v160 = vld [vmem:[#allocation6 + $0x150] sm:$0xff]
    %v161 = vld [vmem:[#allocation6 + $0x158] sm:$0xff]
    %v162 = vld [vmem:[#allocation6 + $0x160] sm:$0xff]
    %v163 = vld [vmem:[#allocation6 + $0x168] sm:$0xff]
    %v164 = vld [vmem:[#allocation6 + $0x170] sm:$0xff]
    %v165 = vld [vmem:[#allocation6 + $0x178] sm:$0xff]
    %v166 = vld [vmem:[#allocation6 + $0x180] sm:$0xff]
    %v167 = vld [vmem:[#allocation6 + $0x188] sm:$0xff]
    %v168 = vld [vmem:[#allocation6 + $0x190] sm:$0xff]
    %v169 = vld [vmem:[#allocation6 + $0x198] sm:$0xff]
    %v170 = vld [vmem:[#allocation6 + $0x1a0] sm:$0xff]
    %v171 = vld [vmem:[#allocation6 + $0x1a8] sm:$0xff]
    %v172 = vld [vmem:[#allocation6 + $0x1b0] sm:$0xff]
    %v173 = vld [vmem:[#allocation6 + $0x1b8] sm:$0xff]
    %v174 = vld [vmem:[#allocation6 + $0x1c0] sm:$0xff]
    %v175 = vld [vmem:[#allocation6 + $0x1c8] sm:$0xff]
    %v176 = vld [vmem:[#allocation6 + $0x1d0] sm:$0xff]
    %v177 = vld [vmem:[#allocation6 + $0x1d8] sm:$0xff]
    %v178 = vld [vmem:[#allocation6 + $0x1e0] sm:$0xff]
    %v179 = vld [vmem:[#allocation6 + $0x1e8] sm:$0xff]
    %v180 = vld [vmem:[#allocation6 + $0x1f0] sm:$0xff]
    %v181 = vld [vmem:[#allocation6 + $0x1f8] sm:$0xff]
    %v182 = vld [vmem:[%s3] sm:$0xf]
    %v184 = vperm.slane %v182, 0
    %v185 = vperm.slane %v182, 1
    %v186 = vperm.slane %v182, 2
    %v187 = vperm.slane %v182, 3
    %192 = vmatpush.msra.mxu0 %v178
    %193 = vmatpush.msra.mxu0 %v174
    %194 = vmatpush.msra.mxu0 %v170
    %195 = vmatpush.msra.mxu0 %v166
    %196 = vmatpush.msra.mxu0 %v162
    %197 = vmatpush.msra.mxu0 %v158
    %198 = vmatpush.msra.mxu0 %v154
    %199 = vmatpush.msra.mxu0 %v150
    %200 = vmatpush.msra.mxu0 %v146
    %201 = vmatpush.msra.mxu0 %v142
    %202 = vmatpush.msra.mxu0 %v138
    %203 = vmatpush.msra.mxu0 %v134
    %204 = vmatpush.msra.mxu0 %v130
    %205 = vmatpush.msra.mxu0 %v126
    %206 = vmatpush.msra.mxu0 %v122
    %207 = vmatpush.msra.mxu0 %v118
    %208 = vmatmul.f32.gmra.mxu0 %v110
    %v209 = vpop.f32.mrf.mxu0
    %v210 = vadd.f32 %v184, %v209
    %211 = vmatmul.f32.gmra.mxu0 %v111
    %v212 = vpop.f32.mrf.mxu0
    %v213 = vadd.f32 %v184, %v212
    %214 = vmatmul.f32.gmra.mxu0 %v112
    %v215 = vpop.f32.mrf.mxu0
    %v216 = vadd.f32 %v184, %v215
    %217 = vmatmul.f32.gmra.mxu0 %v113
    %v218 = vpop.f32.mrf.mxu0
    %v219 = vadd.f32 %v184, %v218
    %220 = vmatmul.f32.gmra.mxu0 %v114
    %v221 = vpop.f32.mrf.mxu0
    %v222 = vadd.f32 %v184, %v221
    %223 = vmatmul.f32.gmra.mxu0 %v115
    %v224 = vpop.f32.mrf.mxu0
    %v225 = vadd.f32 %v184, %v224
    %226 = vmatmul.f32.gmra.mxu0 %v116
    %v227 = vpop.f32.mrf.mxu0
    %v228 = vadd.f32 %v184, %v227
    %229 = vmatmul.f32.gmra.mxu0 %v117
    %v230 = vpop.f32.mrf.mxu0
    %v231 = vadd.f32 %v184, %v230
    %232 = vdwg.mxu0
    %233 = vmatpush.msra.mxu0 %v179
    %234 = vmatpush.msra.mxu0 %v175
    %235 = vmatpush.msra.mxu0 %v171
    %236 = vmatpush.msra.mxu0 %v167
    %237 = vmatpush.msra.mxu0 %v163
    %238 = vmatpush.msra.mxu0 %v159
    %239 = vmatpush.msra.mxu0 %v155
    %240 = vmatpush.msra.mxu0 %v151
    %241 = vmatpush.msra.mxu0 %v147
    %242 = vmatpush.msra.mxu0 %v143
    %243 = vmatpush.msra.mxu0 %v139
    %244 = vmatpush.msra.mxu0 %v135
    %245 = vmatpush.msra.mxu0 %v131
    %246 = vmatpush.msra.mxu0 %v127
    %247 = vmatpush.msra.mxu0 %v123
    %248 = vmatpush.msra.mxu0 %v119
    %249 = vmatmul.f32.gmra.mxu0 %v110
    %v250 = vpop.f32.mrf.mxu0
    %v251 = vadd.f32 %v185, %v250
    %252 = vmatmul.f32.gmra.mxu0 %v111
    %v253 = vpop.f32.mrf.mxu0
    %v254 = vadd.f32 %v185, %v253
    %255 = vmatmul.f32.gmra.mxu0 %v112
    %v256 = vpop.f32.mrf.mxu0
    %v257 = vadd.f32 %v185, %v256
    %258 = vmatmul.f32.gmra.mxu0 %v113
    %v259 = vpop.f32.mrf.mxu0
    %v260 = vadd.f32 %v185, %v259
    %261 = vmatmul.f32.gmra.mxu0 %v114
    %v262 = vpop.f32.mrf.mxu0
    %v263 = vadd.f32 %v185, %v262
    %264 = vmatmul.f32.gmra.mxu0 %v115
    %v265 = vpop.f32.mrf.mxu0
    %v266 = vadd.f32 %v185, %v265
    %267 = vmatmul.f32.gmra.mxu0 %v116
    %v268 = vpop.f32.mrf.mxu0
    %v269 = vadd.f32 %v185, %v268
    %270 = vmatmul.f32.gmra.mxu0 %v117
    %v271 = vpop.f32.mrf.mxu0
    %v272 = vadd.f32 %v185, %v271
    %273 = vdwg.mxu0
    %274 = vmatpush.msra.mxu0 %v180
    %275 = vmatpush.msra.mxu0 %v176
    %276 = vmatpush.msra.mxu0 %v172
    %277 = vmatpush.msra.mxu0 %v168
    %278 = vmatpush.msra.mxu0 %v164
    %279 = vmatpush.msra.mxu0 %v160
    %280 = vmatpush.msra.mxu0 %v156
    %281 = vmatpush.msra.mxu0 %v152
    %282 = vmatpush.msra.mxu0 %v148
    %283 = vmatpush.msra.mxu0 %v144
    %284 = vmatpush.msra.mxu0 %v140
    %285 = vmatpush.msra.mxu0 %v136
    %286 = vmatpush.msra.mxu0 %v132
    %287 = vmatpush.msra.mxu0 %v128
    %288 = vmatpush.msra.mxu0 %v124
    %289 = vmatpush.msra.mxu0 %v120
    %290 = vmatmul.f32.gmra.mxu0 %v110
    %v291 = vpop.f32.mrf.mxu0
    %v292 = vadd.f32 %v186, %v291
    %293 = vmatmul.f32.gmra.mxu0 %v111
    %v294 = vpop.f32.mrf.mxu0
    %v295 = vadd.f32 %v186, %v294
    %296 = vmatmul.f32.gmra.mxu0 %v112
    %v297 = vpop.f32.mrf.mxu0
    %v298 = vadd.f32 %v186, %v297
    %299 = vmatmul.f32.gmra.mxu0 %v113
    %v300 = vpop.f32.mrf.mxu0
    %v301 = vadd.f32 %v186, %v300
    %302 = vmatmul.f32.gmra.mxu0 %v114
    %v303 = vpop.f32.mrf.mxu0
    %v304 = vadd.f32 %v186, %v303
    %305 = vmatmul.f32.gmra.mxu0 %v115
    %v306 = vpop.f32.mrf.mxu0
    %v307 = vadd.f32 %v186, %v306
    %308 = vmatmul.f32.gmra.mxu0 %v116
    %v309 = vpop.f32.mrf.mxu0
    %v310 = vadd.f32 %v186, %v309
    %311 = vmatmul.f32.gmra.mxu0 %v117
    %v312 = vpop.f32.mrf.mxu0
    %v313 = vadd.f32 %v186, %v312
    %314 = vdwg.mxu0
    %315 = vmatpush.msra.mxu0 %v181
    %316 = vmatpush.msra.mxu0 %v177
    %317 = vmatpush.msra.mxu0 %v173
    %318 = vmatpush.msra.mxu0 %v169
    %319 = vmatpush.msra.mxu0 %v165
    %320 = vmatpush.msra.mxu0 %v161
    %321 = vmatpush.msra.mxu0 %v157
    %322 = vmatpush.msra.mxu0 %v153
    %323 = vmatpush.msra.mxu0 %v149
    %324 = vmatpush.msra.mxu0 %v145
    %325 = vmatpush.msra.mxu0 %v141
    %326 = vmatpush.msra.mxu0 %v137
    %327 = vmatpush.msra.mxu0 %v133
    %328 = vmatpush.msra.mxu0 %v129
    %329 = vmatpush.msra.mxu0 %v125
    %330 = vmatpush.msra.mxu0 %v121
    %331 = vmatmul.f32.gmra.mxu0 %v110
    %v332 = vpop.f32.mrf.mxu0
    %v333 = vadd.f32 %v187, %v332
    %334 = vmatmul.f32.gmra.mxu0 %v111
    %v335 = vpop.f32.mrf.mxu0
    %v336 = vadd.f32 %v187, %v335
    %337 = vmatmul.f32.gmra.mxu0 %v112
    %v338 = vpop.f32.mrf.mxu0
    %v339 = vadd.f32 %v187, %v338
    %340 = vmatmul.f32.gmra.mxu0 %v113
    %v341 = vpop.f32.mrf.mxu0
    %v342 = vadd.f32 %v187, %v341
    %343 = vmatmul.f32.gmra.mxu0 %v114
    %v344 = vpop.f32.mrf.mxu0
    %v345 = vadd.f32 %v187, %v344
    %346 = vmatmul.f32.gmra.mxu0 %v115
    %v347 = vpop.f32.mrf.mxu0
    %v348 = vadd.f32 %v187, %v347
    %349 = vmatmul.f32.gmra.mxu0 %v116
    %v350 = vpop.f32.mrf.mxu0
    %v351 = vadd.f32 %v187, %v350
    %352 = vmatmul.f32.gmra.mxu0 %v117
    %v353 = vpop.f32.mrf.mxu0
    %v354 = vadd.f32 %v187, %v353
    %355 = vdwg.mxu0
    %356 = vst [vmem:[#allocation2] sm:$0xff] %v210
    %357 = vst [vmem:[#allocation2 + $0x8] sm:$0xff] %v251
    %358 = vst [vmem:[#allocation2 + $0x10] sm:$0xff] %v292
    %359 = vst [vmem:[#allocation2 + $0x18] sm:$0xff] %v333
    %360 = vst [vmem:[#allocation2 + $0x20] sm:$0xff] %v213
    %361 = vst [vmem:[#allocation2 + $0x28] sm:$0xff] %v254
    %362 = vst [vmem:[#allocation2 + $0x30] sm:$0xff] %v295
    %363 = vst [vmem:[#allocation2 + $0x38] sm:$0xff] %v336
    %364 = vst [vmem:[#allocation2 + $0x40] sm:$0xff] %v216
    %365 = vst [vmem:[#allocation2 + $0x48] sm:$0xff] %v257
    %366 = vst [vmem:[#allocation2 + $0x50] sm:$0xff] %v298
    %367 = vst [vmem:[#allocation2 + $0x58] sm:$0xff] %v339
    %368 = vst [vmem:[#allocation2 + $0x60] sm:$0xff] %v219
    %369 = vst [vmem:[#allocation2 + $0x68] sm:$0xff] %v260
    %370 = vst [vmem:[#allocation2 + $0x70] sm:$0xff] %v301
    %371 = vst [vmem:[#allocation2 + $0x78] sm:$0xff] %v342
    %372 = vst [vmem:[#allocation2 + $0x80] sm:$0xff] %v222
    %373 = vst [vmem:[#allocation2 + $0x88] sm:$0xff] %v263
    %374 = vst [vmem:[#allocation2 + $0x90] sm:$0xff] %v304
    %375 = vst [vmem:[#allocation2 + $0x98] sm:$0xff] %v345
    %376 = vst [vmem:[#allocation2 + $0xa0] sm:$0xff] %v225
    %377 = vst [vmem:[#allocation2 + $0xa8] sm:$0xff] %v266
    %378 = vst [vmem:[#allocation2 + $0xb0] sm:$0xff] %v307
    %379 = vst [vmem:[#allocation2 + $0xb8] sm:$0xff] %v348
    %380 = vst [vmem:[#allocation2 + $0xc0] sm:$0xff] %v228
    %381 = vst [vmem:[#allocation2 + $0xc8] sm:$0xff] %v269
    %382 = vst [vmem:[#allocation2 + $0xd0] sm:$0xff] %v310
    %383 = vst [vmem:[#allocation2 + $0xd8] sm:$0xff] %v351
    %384 = vst [vmem:[#allocation2 + $0xe0] sm:$0xff] %v231
    %385 = vst [vmem:[#allocation2 + $0xe8] sm:$0xff] %v272
    %386 = vst [vmem:[#allocation2 + $0xf0] sm:$0xff] %v313
    %387 = vst [vmem:[#allocation2 + $0xf8] sm:$0xff] %v354
    %v388 = vld [vmem:[#allocation8] sm:$0xff]
    %v389 = vld [vmem:[#allocation8 + $0x8] sm:$0xff]
    %v390 = vld [vmem:[#allocation8 + $0x10] sm:$0xff]
    %v391 = vld [vmem:[#allocation8 + $0x18] sm:$0xff]
    %v392 = vld [vmem:[#allocation8 + $0x20] sm:$0xff]
    %v393 = vld [vmem:[#allocation8 + $0x28] sm:$0xff]
    %v394 = vld [vmem:[#allocation8 + $0x30] sm:$0xff]
    %v395 = vld [vmem:[#allocation8 + $0x38] sm:$0xff]
    %v396 = vld [vmem:[#allocation8 + $0x40] sm:$0xff]
    %v397 = vld [vmem:[#allocation8 + $0x48] sm:$0xff]
    %v398 = vld [vmem:[#allocation8 + $0x50] sm:$0xff]
    %v399 = vld [vmem:[#allocation8 + $0x58] sm:$0xff]
    %v400 = vld [vmem:[#allocation8 + $0x60] sm:$0xff]
    %v401 = vld [vmem:[#allocation8 + $0x68] sm:$0xff]
    %v402 = vld [vmem:[#allocation8 + $0x70] sm:$0xff]
    %v403 = vld [vmem:[#allocation8 + $0x78] sm:$0xff]
    %v404 = vld [vmem:[#allocation8 + $0x80] sm:$0xff]
    %v405 = vld [vmem:[#allocation8 + $0x88] sm:$0xff]
    %v406 = vld [vmem:[#allocation8 + $0x90] sm:$0xff]
    %v407 = vld [vmem:[#allocation8 + $0x98] sm:$0xff]
    %v408 = vld [vmem:[#allocation8 + $0xa0] sm:$0xff]
    %v409 = vld [vmem:[#allocation8 + $0xa8] sm:$0xff]
    %v410 = vld [vmem:[#allocation8 + $0xb0] sm:$0xff]
    %v411 = vld [vmem:[#allocation8 + $0xb8] sm:$0xff]
    %v412 = vld [vmem:[#allocation8 + $0xc0] sm:$0xff]
    %v413 = vld [vmem:[#allocation8 + $0xc8] sm:$0xff]
    %v414 = vld [vmem:[#allocation8 + $0xd0] sm:$0xff]
    %v415 = vld [vmem:[#allocation8 + $0xd8] sm:$0xff]
    %v416 = vld [vmem:[#allocation8 + $0xe0] sm:$0xff]
    %v417 = vld [vmem:[#allocation8 + $0xe8] sm:$0xff]
    %v418 = vld [vmem:[#allocation8 + $0xf0] sm:$0xff]
    %v419 = vld [vmem:[#allocation8 + $0xf8] sm:$0xff]
    %v420 = vld [vmem:[#allocation8 + $0x100] sm:$0xff]
    %v421 = vld [vmem:[#allocation8 + $0x108] sm:$0xff]
    %v422 = vld [vmem:[#allocation8 + $0x110] sm:$0xff]
    %v423 = vld [vmem:[#allocation8 + $0x118] sm:$0xff]
    %v424 = vld [vmem:[#allocation8 + $0x120] sm:$0xff]
    %v425 = vld [vmem:[#allocation8 + $0x128] sm:$0xff]
    %v426 = vld [vmem:[#allocation8 + $0x130] sm:$0xff]
    %v427 = vld [vmem:[#allocation8 + $0x138] sm:$0xff]
    %v428 = vld [vmem:[#allocation8 + $0x140] sm:$0xff]
    %v429 = vld [vmem:[#allocation8 + $0x148] sm:$0xff]
    %v430 = vld [vmem:[#allocation8 + $0x150] sm:$0xff]
    %v431 = vld [vmem:[#allocation8 + $0x158] sm:$0xff]
    %v432 = vld [vmem:[#allocation8 + $0x160] sm:$0xff]
    %v433 = vld [vmem:[#allocation8 + $0x168] sm:$0xff]
    %v434 = vld [vmem:[#allocation8 + $0x170] sm:$0xff]
    %v435 = vld [vmem:[#allocation8 + $0x178] sm:$0xff]
    %v436 = vld [vmem:[#allocation8 + $0x180] sm:$0xff]
    %v437 = vld [vmem:[#allocation8 + $0x188] sm:$0xff]
    %v438 = vld [vmem:[#allocation8 + $0x190] sm:$0xff]
    %v439 = vld [vmem:[#allocation8 + $0x198] sm:$0xff]
    %v440 = vld [vmem:[#allocation8 + $0x1a0] sm:$0xff]
    %v441 = vld [vmem:[#allocation8 + $0x1a8] sm:$0xff]
    %v442 = vld [vmem:[#allocation8 + $0x1b0] sm:$0xff]
    %v443 = vld [vmem:[#allocation8 + $0x1b8] sm:$0xff]
    %v444 = vld [vmem:[#allocation8 + $0x1c0] sm:$0xff]
    %v445 = vld [vmem:[#allocation8 + $0x1c8] sm:$0xff]
    %v446 = vld [vmem:[#allocation8 + $0x1d0] sm:$0xff]
    %v447 = vld [vmem:[#allocation8 + $0x1d8] sm:$0xff]
    %v448 = vld [vmem:[#allocation8 + $0x1e0] sm:$0xff]
    %v449 = vld [vmem:[#allocation8 + $0x1e8] sm:$0xff]
    %v450 = vld [vmem:[#allocation8 + $0x1f0] sm:$0xff]
    %v451 = vld [vmem:[#allocation8 + $0x1f8] sm:$0xff]
    %s452 = smul.u32 0, 4
    %s453 = smul.addr %s452, 8
    %s454 = scalar_lea.vmem [#allocation2], %s453
    %v455 = vld [vmem:[%s454] sm:$0xff]
    %v456 = vld [vmem:[%s454 + $0x8] sm:$0xff]
    %v457 = vld [vmem:[%s454 + $0x10] sm:$0xff]
    %v458 = vld [vmem:[%s454 + $0x18] sm:$0xff]
    %459 = vmatpush.msra.mxu0 %v448
    %460 = vmatpush.msra.mxu0 %v444
    %461 = vmatpush.msra.mxu0 %v440
    %462 = vmatpush.msra.mxu0 %v436
    %463 = vmatpush.msra.mxu0 %v432
    %464 = vmatpush.msra.mxu0 %v428
    %465 = vmatpush.msra.mxu0 %v424
    %466 = vmatpush.msra.mxu0 %v420
    %467 = vmatpush.msra.mxu0 %v416
    %468 = vmatpush.msra.mxu0 %v412
    %469 = vmatpush.msra.mxu0 %v408
    %470 = vmatpush.msra.mxu0 %v404
    %471 = vmatpush.msra.mxu0 %v400
    %472 = vmatpush.msra.mxu0 %v396
    %473 = vmatpush.msra.mxu0 %v392
    %474 = vmatpush.msra.mxu0 %v388
    %475 = vmatmul.f32.gmra.mxu0 0.0
    %v476 = vpop.f32.mrf.mxu0
    %v477 = vadd.f32 0.0, %v476
    %478 = vdwg.mxu0
    %479 = vmatpush.msra.mxu0 %v449
    %480 = vmatpush.msra.mxu0 %v445
    %481 = vmatpush.msra.mxu0 %v441
    %482 = vmatpush.msra.mxu0 %v437
    %483 = vmatpush.msra.mxu0 %v433
    %484 = vmatpush.msra.mxu0 %v429
    %485 = vmatpush.msra.mxu0 %v425
    %486 = vmatpush.msra.mxu0 %v421
    %487 = vmatpush.msra.mxu0 %v417
    %488 = vmatpush.msra.mxu0 %v413
    %489 = vmatpush.msra.mxu0 %v409
    %490 = vmatpush.msra.mxu0 %v405
    %491 = vmatpush.msra.mxu0 %v401
    %492 = vmatpush.msra.mxu0 %v397
    %493 = vmatpush.msra.mxu0 %v393
    %494 = vmatpush.msra.mxu0 %v389
    %495 = vmatmul.f32.gmra.mxu0 0.0
    %v496 = vpop.f32.mrf.mxu0
    %v497 = vadd.f32 0.0, %v496
    %498 = vdwg.mxu0
    %499 = vmatpush.msra.mxu0 %v450
    %500 = vmatpush.msra.mxu0 %v446
    %501 = vmatpush.msra.mxu0 %v442
    %502 = vmatpush.msra.mxu0 %v438
    %503 = vmatpush.msra.mxu0 %v434
    %504 = vmatpush.msra.mxu0 %v430
    %505 = vmatpush.msra.mxu0 %v426
    %506 = vmatpush.msra.mxu0 %v422
    %507 = vmatpush.msra.mxu0 %v418
    %508 = vmatpush.msra.mxu0 %v414
    %509 = vmatpush.msra.mxu0 %v410
    %510 = vmatpush.msra.mxu0 %v406
    %511 = vmatpush.msra.mxu0 %v402
    %512 = vmatpush.msra.mxu0 %v398
    %513 = vmatpush.msra.mxu0 %v394
    %514 = vmatpush.msra.mxu0 %v390
    %515 = vmatmul.f32.gmra.mxu0 0.0
    %v516 = vpop.f32.mrf.mxu0
    %v517 = vadd.f32 0.0, %v516
    %518 = vdwg.mxu0
    %519 = vmatpush.msra.mxu0 %v451
    %520 = vmatpush.msra.mxu0 %v447
    %521 = vmatpush.msra.mxu0 %v443
    %522 = vmatpush.msra.mxu0 %v439
    %523 = vmatpush.msra.mxu0 %v435
    %524 = vmatpush.msra.mxu0 %v431
    %525 = vmatpush.msra.mxu0 %v427
    %526 = vmatpush.msra.mxu0 %v423
    %527 = vmatpush.msra.mxu0 %v419
    %528 = vmatpush.msra.mxu0 %v415
    %529 = vmatpush.msra.mxu0 %v411
    %530 = vmatpush.msra.mxu0 %v407
    %531 = vmatpush.msra.mxu0 %v403
    %532 = vmatpush.msra.mxu0 %v399
    %533 = vmatpush.msra.mxu0 %v395
    %534 = vmatpush.msra.mxu0 %v391
    %535 = vmatmul.f32.gmra.mxu0 0.0
    %v536 = vpop.f32.mrf.mxu0
    %v537 = vadd.f32 0.0, %v536
    %538 = vdwg.mxu0
    %v539 = vadd.f32 %v455, %v477
    %v540 = vadd.f32 %v456, %v497
    %v541 = vadd.f32 %v457, %v517
    %v542 = vadd.f32 %v458, %v537
    %v543 = vmul.f32 %v539, 0.5
    %v544 = vtanh.pop %v543
    %v545 = vmul.f32 %v544, 0.5
    %v546 = vadd.f32 %v545, 0.5
    %v547 = vmul.f32 %v540, 0.5
    %v548 = vtanh.pop %v547
    %v549 = vmul.f32 %v548, 0.5
    %v550 = vadd.f32 %v549, 0.5
    %v551 = vtanh.pop %v541
    %v552 = vmul.f32 %v542, 0.5
    %v553 = vtanh.pop %v552
    %v554 = vmul.f32 %v553, 0.5
    %v555 = vadd.f32 %v554, 0.5
    %v556 = vmul.f32 %v550, 0.0
    %v557 = vmul.f32 %v546, %v551
    %v558 = vadd.f32 %v556, %v557
    %v559 = vtanh.pop %v558
    %v560 = vmul.f32 %v555, %v559
    %s561 = smul.u32 1, 4
    %s562 = smul.addr %s561, 8
    %s563 = scalar_lea.vmem [#allocation2], %s562
    %v564 = vld [vmem:[%s563] sm:$0xff]
    %v565 = vld [vmem:[%s563 + $0x8] sm:$0xff]
    %v566 = vld [vmem:[%s563 + $0x10] sm:$0xff]
    %v567 = vld [vmem:[%s563 + $0x18] sm:$0xff]
    %568 = vmatpush.msra.mxu0 %v448
    %569 = vmatpush.msra.mxu0 %v444
    %570 = vmatpush.msra.mxu0 %v440
    %571 = vmatpush.msra.mxu0 %v436
    %572 = vmatpush.msra.mxu0 %v432
    %573 = vmatpush.msra.mxu0 %v428
    %574 = vmatpush.msra.mxu0 %v424
    %575 = vmatpush.msra.mxu0 %v420
    %576 = vmatpush.msra.mxu0 %v416
    %577 = vmatpush.msra.mxu0 %v412
    %578 = vmatpush.msra.mxu0 %v408
    %579 = vmatpush.msra.mxu0 %v404
    %580 = vmatpush.msra.mxu0 %v400
    %581 = vmatpush.msra.mxu0 %v396
    %582 = vmatpush.msra.mxu0 %v392
    %583 = vmatpush.msra.mxu0 %v388
    %584 = vmatmul.f32.gmra.mxu0 %v560
    %v585 = vpop.f32.mrf.mxu0
    %v586 = vadd.f32 0.0, %v585
    %587 = vdwg.mxu0
    %588 = vmatpush.msra.mxu0 %v449
    %589 = vmatpush.msra.mxu0 %v445
    %590 = vmatpush.msra.mxu0 %v441
    %591 = vmatpush.msra.mxu0 %v437
    %592 = vmatpush.msra.mxu0 %v433
    %593 = vmatpush.msra.mxu0 %v429
    %594 = vmatpush.msra.mxu0 %v425
    %595 = vmatpush.msra.mxu0 %v421
    %596 = vmatpush.msra.mxu0 %v417
    %597 = vmatpush.msra.mxu0 %v413
    %598 = vmatpush.msra.mxu0 %v409
    %599 = vmatpush.msra.mxu0 %v405
    %600 = vmatpush.msra.mxu0 %v401
    %601 = vmatpush.msra.mxu0 %v397
    %602 = vmatpush.msra.mxu0 %v393
    %603 = vmatpush.msra.mxu0 %v389
    %604 = vmatmul.f32.gmra.mxu0 %v560
    %v605 = vpop.f32.mrf.mxu0
    %v606 = vadd.f32 0.0, %v605
    %607 = vdwg.mxu0
    %608 = vmatpush.msra.mxu0 %v450
    %609 = vmatpush.msra.mxu0 %v446
    %610 = vmatpush.msra.mxu0 %v442
    %611 = vmatpush.msra.mxu0 %v438
    %612 = vmatpush.msra.mxu0 %v434
    %613 = vmatpush.msra.mxu0 %v430
    %614 = vmatpush.msra.mxu0 %v426
    %615 = vmatpush.msra.mxu0 %v422
    %616 = vmatpush.msra.mxu0 %v418
    %617 = vmatpush.msra.mxu0 %v414
    %618 = vmatpush.msra.mxu0 %v410
    %619 = vmatpush.msra.mxu0 %v406
    %620 = vmatpush.msra.mxu0 %v402
    %621 = vmatpush.msra.mxu0 %v398
    %622 = vmatpush.msra.mxu0 %v394
    %623 = vmatpush.msra.mxu0 %v390
    %624 = vmatmul.f32.gmra.mxu0 %v560
    %v625 = vpop.f32.mrf.mxu0
    %v626 = vadd.f32 0.0, %v625
    %627 = vdwg.mxu0
    %628 = vmatpush.msra.mxu0 %v451
    %629 = vmatpush.msra.mxu0 %v447
    %630 = vmatpush.msra.mxu0 %v443
    %631 = vmatpush.msra.mxu0 %v439
    %632 = vmatpush.msra.mxu0 %v435
    %633 = vmatpush.msra.mxu0 %v431
    %634 = vmatpush.msra.mxu0 %v427
    %635 = vmatpush.msra.mxu0 %v423
    %636 = vmatpush.msra.mxu0 %v419
    %637 = vmatpush.msra.mxu0 %v415
    %638 = vmatpush.msra.mxu0 %v411
    %639 = vmatpush.msra.mxu0 %v407
    %640 = vmatpush.msra.mxu0 %v403
    %641 = vmatpush.msra.mxu0 %v399
    %642 = vmatpush.msra.mxu0 %v395
    %643 = vmatpush.msra.mxu0 %v391
    %644 = vmatmul.f32.gmra.mxu0 %v560
    %v645 = vpop.f32.mrf.mxu0
    %v646 = vadd.f32 0.0, %v645
    %647 = vdwg.mxu0
    %v648 = vadd.f32 %v564, %v586
    %v649 = vadd.f32 %v565, %v606
    %v650 = vadd.f32 %v566, %v626
    %v651 = vadd.f32 %v567, %v646
    %v652 = vmul.f32 %v648, 0.5
    %v653 = vtanh.pop %v652
    %v654 = vmul.f32 %v653, 0.5
    %v655 = vadd.f32 %v654, 0.5
    %v656 = vmul.f32 %v649, 0.5
    %v657 = vtanh.pop %v656
    %v658 = vmul.f32 %v657, 0.5
    %v659 = vadd.f32 %v658, 0.5
    %v660 = vtanh.pop %v650
    %v661 = vmul.f32 %v651, 0.5
    %v662 = vtanh.pop %v661
    %v663 = vmul.f32 %v662, 0.5
    %v664 = vadd.f32 %v663, 0.5
    %v665 = vmul.f32 %v659, %v558
    %v666 = vmul.f32 %v655, %v660
    %v667 = vadd.f32 %v665, %v666
    %v668 = vtanh.pop %v667
    %v669 = vmul.f32 %v664, %v668
    %s670 = smul.u32 2, 4
    %s671 = smul.addr %s670, 8
    %s672 = scalar_lea.vmem [#allocation2], %s671
    %v673 = vld [vmem:[%s672] sm:$0xff]
    %v674 = vld [vmem:[%s672 + $0x8] sm:$0xff]
    %v675 = vld [vmem:[%s672 + $0x10] sm:$0xff]
    %v676 = vld [vmem:[%s672 + $0x18] sm:$0xff]
    %677 = vmatpush.msra.mxu0 %v448
    %678 = vmatpush.msra.mxu0 %v444
    %679 = vmatpush.msra.mxu0 %v440
    %680 = vmatpush.msra.mxu0 %v436
    %681 = vmatpush.msra.mxu0 %v432
    %682 = vmatpush.msra.mxu0 %v428
    %683 = vmatpush.msra.mxu0 %v424
    %684 = vmatpush.msra.mxu0 %v420
    %685 = vmatpush.msra.mxu0 %v416
    %686 = vmatpush.msra.mxu0 %v412
    %687 = vmatpush.msra.mxu0 %v408
    %688 = vmatpush.msra.mxu0 %v404
    %689 = vmatpush.msra.mxu0 %v400
    %690 = vmatpush.msra.mxu0 %v396
    %691 = vmatpush.msra.mxu0 %v392
    %692 = vmatpush.msra.mxu0 %v388
    %693 = vmatmul.f32.gmra.mxu0 %v669
    %v694 = vpop.f32.mrf.mxu0
    %v695 = vadd.f32 0.0, %v694
    %696 = vdwg.mxu0
    %697 = vmatpush.msra.mxu0 %v449
    %698 = vmatpush.msra.mxu0 %v445
    %699 = vmatpush.msra.mxu0 %v441
    %700 = vmatpush.msra.mxu0 %v437
    %701 = vmatpush.msra.mxu0 %v433
    %702 = vmatpush.msra.mxu0 %v429
    %703 = vmatpush.msra.mxu0 %v425
    %704 = vmatpush.msra.mxu0 %v421
    %705 = vmatpush.msra.mxu0 %v417
    %706 = vmatpush.msra.mxu0 %v413
    %707 = vmatpush.msra.mxu0 %v409
    %708 = vmatpush.msra.mxu0 %v405
    %709 = vmatpush.msra.mxu0 %v401
    %710 = vmatpush.msra.mxu0 %v397
    %711 = vmatpush.msra.mxu0 %v393
    %712 = vmatpush.msra.mxu0 %v389
    %713 = vmatmul.f32.gmra.mxu0 %v669
    %v714 = vpop.f32.mrf.mxu0
    %v715 = vadd.f32 0.0, %v714
    %716 = vdwg.mxu0
    %717 = vmatpush.msra.mxu0 %v450
    %718 = vmatpush.msra.mxu0 %v446
    %719 = vmatpush.msra.mxu0 %v442
    %720 = vmatpush.msra.mxu0 %v438
    %721 = vmatpush.msra.mxu0 %v434
    %722 = vmatpush.msra.mxu0 %v430
    %723 = vmatpush.msra.mxu0 %v426
    %724 = vmatpush.msra.mxu0 %v422
    %725 = vmatpush.msra.mxu0 %v418
    %726 = vmatpush.msra.mxu0 %v414
    %727 = vmatpush.msra.mxu0 %v410
    %728 = vmatpush.msra.mxu0 %v406
    %729 = vmatpush.msra.mxu0 %v402
    %730 = vmatpush.msra.mxu0 %v398
    %731 = vmatpush.msra.mxu0 %v394
    %732 = vmatpush.msra.mxu0 %v390
    %733 = vmatmul.f32.gmra.mxu0 %v669
    %v734 = vpop.f32.mrf.mxu0
    %v735 = vadd.f32 0.0, %v734
    %736 = vdwg.mxu0
    %737 = vmatpush.msra.mxu0 %v451
    %738 = vmatpush.msra.mxu0 %v447
    %739 = vmatpush.msra.mxu0 %v443
    %740 = vmatpush.msra.mxu0 %v439
    %741 = vmatpush.msra.mxu0 %v435
    %742 = vmatpush.msra.mxu0 %v431
    %743 = vmatpush.msra.mxu0 %v427
    %744 = vmatpush.msra.mxu0 %v423
    %745 = vmatpush.msra.mxu0 %v419
    %746 = vmatpush.msra.mxu0 %v415
    %747 = vmatpush.msra.mxu0 %v411
    %748 = vmatpush.msra.mxu0 %v407
    %749 = vmatpush.msra.mxu0 %v403
    %750 = vmatpush.msra.mxu0 %v399
    %751 = vmatpush.msra.mxu0 %v395
    %752 = vmatpush.msra.mxu0 %v391
    %753 = vmatmul.f32.gmra.mxu0 %v669
    %v754 = vpop.f32.mrf.mxu0
    %v755 = vadd.f32 0.0, %v754
    %756 = vdwg.mxu0
    %v757 = vadd.f32 %v673, %v695
    %v758 = vadd.f32 %v674, %v715
    %v759 = vadd.f32 %v675, %v735
    %v760 = vadd.f32 %v676, %v755
    %v761 = vmul.f32 %v757, 0.5
    %v762 = vtanh.pop %v761
    %v763 = vmul.f32 %v762, 0.5
    %v764 = vadd.f32 %v763, 0.5
    %v765 = vmul.f32 %v758, 0.5
    %v766 = vtanh.pop %v765
    %v767 = vmul.f32 %v766, 0.5
    %v768 = vadd.f32 %v767, 0.5
    %v769 = vtanh.pop %v759
    %v770 = vmul.f32 %v760, 0.5
    %v771 = vtanh.pop %v770
    %v772 = vmul.f32 %v771, 0.5
    %v773 = vadd.f32 %v772, 0.5
    %v774 = vmul.f32 %v768, %v667
    %v775 = vmul.f32 %v764, %v769
    %v776 = vadd.f32 %v774, %v775
    %v777 = vtanh.pop %v776
    %v778 = vmul.f32 %v773, %v777
    %s779 = smul.u32 3, 4
    %s780 = smul.addr %s779, 8
    %s781 = scalar_lea.vmem [#allocation2], %s780
    %v782 = vld [vmem:[%s781] sm:$0xff]
    %v783 = vld [vmem:[%s781 + $0x8] sm:$0xff]
    %v784 = vld [vmem:[%s781 + $0x10] sm:$0xff]
    %v785 = vld [vmem:[%s781 + $0x18] sm:$0xff]
    %786 = vmatpush.msra.mxu0 %v448
    %787 = vmatpush.msra.mxu0 %v444
    %788 = vmatpush.msra.mxu0 %v440
    %789 = vmatpush.msra.mxu0 %v436
    %790 = vmatpush.msra.mxu0 %v432
    %791 = vmatpush.msra.mxu0 %v428
    %792 = vmatpush.msra.mxu0 %v424
    %793 = vmatpush.msra.mxu0 %v420
    %794 = vmatpush.msra.mxu0 %v416
    %795 = vmatpush.msra.mxu0 %v412
    %796 = vmatpush.msra.mxu0 %v408
    %797 = vmatpush.msra.mxu0 %v404
    %798 = vmatpush.msra.mxu0 %v400
    %799 = vmatpush.msra.mxu0 %v396
    %800 = vmatpush.msra.mxu0 %v392
    %801 = vmatpush.msra.mxu0 %v388
    %802 = vmatmul.f32.gmra.mxu0 %v778
    %v803 = vpop.f32.mrf.mxu0
    %v804 = vadd.f32 0.0, %v803
    %805 = vdwg.mxu0
    %806 = vmatpush.msra.mxu0 %v449
    %807 = vmatpush.msra.mxu0 %v445
    %808 = vmatpush.msra.mxu0 %v441
    %809 = vmatpush.msra.mxu0 %v437
    %810 = vmatpush.msra.mxu0 %v433
    %811 = vmatpush.msra.mxu0 %v429
    %812 = vmatpush.msra.mxu0 %v425
    %813 = vmatpush.msra.mxu0 %v421
    %814 = vmatpush.msra.mxu0 %v417
    %815 = vmatpush.msra.mxu0 %v413
    %816 = vmatpush.msra.mxu0 %v409
    %817 = vmatpush.msra.mxu0 %v405
    %818 = vmatpush.msra.mxu0 %v401
    %819 = vmatpush.msra.mxu0 %v397
    %820 = vmatpush.msra.mxu0 %v393
    %821 = vmatpush.msra.mxu0 %v389
    %822 = vmatmul.f32.gmra.mxu0 %v778
    %v823 = vpop.f32.mrf.mxu0
    %v824 = vadd.f32 0.0, %v823
    %825 = vdwg.mxu0
    %826 = vmatpush.msra.mxu0 %v450
    %827 = vmatpush.msra.mxu0 %v446
    %828 = vmatpush.msra.mxu0 %v442
    %829 = vmatpush.msra.mxu0 %v438
    %830 = vmatpush.msra.mxu0 %v434
    %831 = vmatpush.msra.mxu0 %v430
    %832 = vmatpush.msra.mxu0 %v426
    %833 = vmatpush.msra.mxu0 %v422
    %834 = vmatpush.msra.mxu0 %v418
    %835 = vmatpush.msra.mxu0 %v414
    %836 = vmatpush.msra.mxu0 %v410
    %837 = vmatpush.msra.mxu0 %v406
    %838 = vmatpush.msra.mxu0 %v402
    %839 = vmatpush.msra.mxu0 %v398
    %840 = vmatpush.msra.mxu0 %v394
    %841 = vmatpush.msra.mxu0 %v390
    %842 = vmatmul.f32.gmra.mxu0 %v778
    %v843 = vpop.f32.mrf.mxu0
    %v844 = vadd.f32 0.0, %v843
    %845 = vdwg.mxu0
    %846 = vmatpush.msra.mxu0 %v451
    %847 = vmatpush.msra.mxu0 %v447
    %848 = vmatpush.msra.mxu0 %v443
    %849 = vmatpush.msra.mxu0 %v439
    %850 = vmatpush.msra.mxu0 %v435
    %851 = vmatpush.msra.mxu0 %v431
    %852 = vmatpush.msra.mxu0 %v427
    %853 = vmatpush.msra.mxu0 %v423
    %854 = vmatpush.msra.mxu0 %v419
    %855 = vmatpush.msra.mxu0 %v415
    %856 = vmatpush.msra.mxu0 %v411
    %857 = vmatpush.msra.mxu0 %v407
    %858 = vmatpush.msra.mxu0 %v403
    %859 = vmatpush.msra.mxu0 %v399
    %860 = vmatpush.msra.mxu0 %v395
    %861 = vmatpush.msra.mxu0 %v391
    %862 = vmatmul.f32.gmra.mxu0 %v778
    %v863 = vpop.f32.mrf.mxu0
    %v864 = vadd.f32 0.0, %v863
    %865 = vdwg.mxu0
    %v866 = vadd.f32 %v782, %v804
    %v867 = vadd.f32 %v783, %v824
    %v868 = vadd.f32 %v784, %v844
    %v869 = vadd.f32 %v785, %v864
    %v870 = vmul.f32 %v866, 0.5
    %v871 = vtanh.pop %v870
    %v872 = vmul.f32 %v871, 0.5
    %v873 = vadd.f32 %v872, 0.5
    %v874 = vmul.f32 %v867, 0.5
    %v875 = vtanh.pop %v874
    %v876 = vmul.f32 %v875, 0.5
    %v877 = vadd.f32 %v876, 0.5
    %v878 = vtanh.pop %v868
    %v879 = vmul.f32 %v869, 0.5
    %v880 = vtanh.pop %v879
    %v881 = vmul.f32 %v880, 0.5
    %v882 = vadd.f32 %v881, 0.5
    %v883 = vmul.f32 %v877, %v776
    %v884 = vmul.f32 %v873, %v878
    %v885 = vadd.f32 %v883, %v884
    %v886 = vtanh.pop %v885
    %v887 = vmul.f32 %v882, %v886
    %s888 = smul.u32 4, 4
    %s889 = smul.addr %s888, 8
    %s890 = scalar_lea.vmem [#allocation2], %s889
    %v891 = vld [vmem:[%s890] sm:$0xff]
    %v892 = vld [vmem:[%s890 + $0x8] sm:$0xff]
    %v893 = vld [vmem:[%s890 + $0x10] sm:$0xff]
    %v894 = vld [vmem:[%s890 + $0x18] sm:$0xff]
    %895 = vmatpush.msra.mxu0 %v448
    %896 = vmatpush.msra.mxu0 %v444
    %897 = vmatpush.msra.mxu0 %v440
    %898 = vmatpush.msra.mxu0 %v436
    %899 = vmatpush.msra.mxu0 %v432
    %900 = vmatpush.msra.mxu0 %v428
    %901 = vmatpush.msra.mxu0 %v424
    %902 = vmatpush.msra.mxu0 %v420
    %903 = vmatpush.msra.mxu0 %v416
    %904 = vmatpush.msra.mxu0 %v412
    %905 = vmatpush.msra.mxu0 %v408
    %906 = vmatpush.msra.mxu0 %v404
    %907 = vmatpush.msra.mxu0 %v400
    %908 = vmatpush.msra.mxu0 %v396
    %909 = vmatpush.msra.mxu0 %v392
    %910 = vmatpush.msra.mxu0 %v388
    %911 = vmatmul.f32.gmra.mxu0 %v887
    %v912 = vpop.f32.mrf.mxu0
    %v913 = vadd.f32 0.0, %v912
    %914 = vdwg.mxu0
    %915 = vmatpush.msra.mxu0 %v449
    %916 = vmatpush.msra.mxu0 %v445
    %917 = vmatpush.msra.mxu0 %v441
    %918 = vmatpush.msra.mxu0 %v437
    %919 = vmatpush.msra.mxu0 %v433
    %920 = vmatpush.msra.mxu0 %v429
    %921 = vmatpush.msra.mxu0 %v425
    %922 = vmatpush.msra.mxu0 %v421
    %923 = vmatpush.msra.mxu0 %v417
    %924 = vmatpush.msra.mxu0 %v413
    %925 = vmatpush.msra.mxu0 %v409
    %926 = vmatpush.msra.mxu0 %v405
    %927 = vmatpush.msra.mxu0 %v401
    %928 = vmatpush.msra.mxu0 %v397
    %929 = vmatpush.msra.mxu0 %v393
    %930 = vmatpush.msra.mxu0 %v389
    %931 = vmatmul.f32.gmra.mxu0 %v887
    %v932 = vpop.f32.mrf.mxu0
    %v933 = vadd.f32 0.0, %v932
    %934 = vdwg.mxu0
    %935 = vmatpush.msra.mxu0 %v450
    %936 = vmatpush.msra.mxu0 %v446
    %937 = vmatpush.msra.mxu0 %v442
    %938 = vmatpush.msra.mxu0 %v438
    %939 = vmatpush.msra.mxu0 %v434
    %940 = vmatpush.msra.mxu0 %v430
    %941 = vmatpush.msra.mxu0 %v426
    %942 = vmatpush.msra.mxu0 %v422
    %943 = vmatpush.msra.mxu0 %v418
    %944 = vmatpush.msra.mxu0 %v414
    %945 = vmatpush.msra.mxu0 %v410
    %946 = vmatpush.msra.mxu0 %v406
    %947 = vmatpush.msra.mxu0 %v402
    %948 = vmatpush.msra.mxu0 %v398
    %949 = vmatpush.msra.mxu0 %v394
    %950 = vmatpush.msra.mxu0 %v390
    %951 = vmatmul.f32.gmra.mxu0 %v887
    %v952 = vpop.f32.mrf.mxu0
    %v953 = vadd.f32 0.0, %v952
    %954 = vdwg.mxu0
    %955 = vmatpush.msra.mxu0 %v451
    %956 = vmatpush.msra.mxu0 %v447
    %957 = vmatpush.msra.mxu0 %v443
    %958 = vmatpush.msra.mxu0 %v439
    %959 = vmatpush.msra.mxu0 %v435
    %960 = vmatpush.msra.mxu0 %v431
    %961 = vmatpush.msra.mxu0 %v427
    %962 = vmatpush.msra.mxu0 %v423
    %963 = vmatpush.msra.mxu0 %v419
    %964 = vmatpush.msra.mxu0 %v415
    %965 = vmatpush.msra.mxu0 %v411
    %966 = vmatpush.msra.mxu0 %v407
    %967 = vmatpush.msra.mxu0 %v403
    %968 = vmatpush.msra.mxu0 %v399
    %969 = vmatpush.msra.mxu0 %v395
    %970 = vmatpush.msra.mxu0 %v391
    %971 = vmatmul.f32.gmra.mxu0 %v887
    %v972 = vpop.f32.mrf.mxu0
    %v973 = vadd.f32 0.0, %v972
    %974 = vdwg.mxu0
    %v975 = vadd.f32 %v891, %v913
    %v976 = vadd.f32 %v892, %v933
    %v977 = vadd.f32 %v893, %v953
    %v978 = vadd.f32 %v894, %v973
    %v979 = vmul.f32 %v975, 0.5
    %v980 = vtanh.pop %v979
    %v981 = vmul.f32 %v980, 0.5
    %v982 = vadd.f32 %v981, 0.5
    %v983 = vmul.f32 %v976, 0.5
    %v984 = vtanh.pop %v983
    %v985 = vmul.f32 %v984, 0.5
    %v986 = vadd.f32 %v985, 0.5
    %v987 = vtanh.pop %v977
    %v988 = vmul.f32 %v978, 0.5
    %v989 = vtanh.pop %v988
    %v990 = vmul.f32 %v989, 0.5
    %v991 = vadd.f32 %v990, 0.5
    %v992 = vmul.f32 %v986, %v885
    %v993 = vmul.f32 %v982, %v987
    %v994 = vadd.f32 %v992, %v993
    %v995 = vtanh.pop %v994
    %v996 = vmul.f32 %v991, %v995
    %s997 = smul.u32 5, 4
    %s998 = smul.addr %s997, 8
    %s999 = scalar_lea.vmem [#allocation2], %s998
    %v1000 = vld [vmem:[%s999] sm:$0xff]
    %v1001 = vld [vmem:[%s999 + $0x8] sm:$0xff]
    %v1002 = vld [vmem:[%s999 + $0x10] sm:$0xff]
    %v1003 = vld [vmem:[%s999 + $0x18] sm:$0xff]
    %1004 = vmatpush.msra.mxu0 %v448
    %1005 = vmatpush.msra.mxu0 %v444
    %1006 = vmatpush.msra.mxu0 %v440
    %1007 = vmatpush.msra.mxu0 %v436
    %1008 = vmatpush.msra.mxu0 %v432
    %1009 = vmatpush.msra.mxu0 %v428
    %1010 = vmatpush.msra.mxu0 %v424
    %1011 = vmatpush.msra.mxu0 %v420
    %1012 = vmatpush.msra.mxu0 %v416
    %1013 = vmatpush.msra.mxu0 %v412
    %1014 = vmatpush.msra.mxu0 %v408
    %1015 = vmatpush.msra.mxu0 %v404
    %1016 = vmatpush.msra.mxu0 %v400
    %1017 = vmatpush.msra.mxu0 %v396
    %1018 = vmatpush.msra.mxu0 %v392
    %1019 = vmatpush.msra.mxu0 %v388
    %1020 = vmatmul.f32.gmra.mxu0 %v996
    %v1021 = vpop.f32.mrf.mxu0
    %v1022 = vadd.f32 0.0, %v1021
    %1023 = vdwg.mxu0
    %1024 = vmatpush.msra.mxu0 %v449
    %1025 = vmatpush.msra.mxu0 %v445
    %1026 = vmatpush.msra.mxu0 %v441
    %1027 = vmatpush.msra.mxu0 %v437
    %1028 = vmatpush.msra.mxu0 %v433
    %1029 = vmatpush.msra.mxu0 %v429
    %1030 = vmatpush.msra.mxu0 %v425
    %1031 = vmatpush.msra.mxu0 %v421
    %1032 = vmatpush.msra.mxu0 %v417
    %1033 = vmatpush.msra.mxu0 %v413
    %1034 = vmatpush.msra.mxu0 %v409
    %1035 = vmatpush.msra.mxu0 %v405
    %1036 = vmatpush.msra.mxu0 %v401
    %1037 = vmatpush.msra.mxu0 %v397
    %1038 = vmatpush.msra.mxu0 %v393
    %1039 = vmatpush.msra.mxu0 %v389
    %1040 = vmatmul.f32.gmra.mxu0 %v996
    %v1041 = vpop.f32.mrf.mxu0
    %v1042 = vadd.f32 0.0, %v1041
    %1043 = vdwg.mxu0
    %1044 = vmatpush.msra.mxu0 %v450
    %1045 = vmatpush.msra.mxu0 %v446
    %1046 = vmatpush.msra.mxu0 %v442
    %1047 = vmatpush.msra.mxu0 %v438
    %1048 = vmatpush.msra.mxu0 %v434
    %1049 = vmatpush.msra.mxu0 %v430
    %1050 = vmatpush.msra.mxu0 %v426
    %1051 = vmatpush.msra.mxu0 %v422
    %1052 = vmatpush.msra.mxu0 %v418
    %1053 = vmatpush.msra.mxu0 %v414
    %1054 = vmatpush.msra.mxu0 %v410
    %1055 = vmatpush.msra.mxu0 %v406
    %1056 = vmatpush.msra.mxu0 %v402
    %1057 = vmatpush.msra.mxu0 %v398
    %1058 = vmatpush.msra.mxu0 %v394
    %1059 = vmatpush.msra.mxu0 %v390
    %1060 = vmatmul.f32.gmra.mxu0 %v996
    %v1061 = vpop.f32.mrf.mxu0
    %v1062 = vadd.f32 0.0, %v1061
    %1063 = vdwg.mxu0
    %1064 = vmatpush.msra.mxu0 %v451
    %1065 = vmatpush.msra.mxu0 %v447
    %1066 = vmatpush.msra.mxu0 %v443
    %1067 = vmatpush.msra.mxu0 %v439
    %1068 = vmatpush.msra.mxu0 %v435
    %1069 = vmatpush.msra.mxu0 %v431
    %1070 = vmatpush.msra.mxu0 %v427
    %1071 = vmatpush.msra.mxu0 %v423
    %1072 = vmatpush.msra.mxu0 %v419
    %1073 = vmatpush.msra.mxu0 %v415
    %1074 = vmatpush.msra.mxu0 %v411
    %1075 = vmatpush.msra.mxu0 %v407
    %1076 = vmatpush.msra.mxu0 %v403
    %1077 = vmatpush.msra.mxu0 %v399
    %1078 = vmatpush.msra.mxu0 %v395
    %1079 = vmatpush.msra.mxu0 %v391
    %1080 = vmatmul.f32.gmra.mxu0 %v996
    %v1081 = vpop.f32.mrf.mxu0
    %v1082 = vadd.f32 0.0, %v1081
    %1083 = vdwg.mxu0
    %v1084 = vadd.f32 %v1000, %v1022
    %v1085 = vadd.f32 %v1001, %v1042
    %v1086 = vadd.f32 %v1002, %v1062
    %v1087 = vadd.f32 %v1003, %v1082
    %v1088 = vmul.f32 %v1084, 0.5
    %v1089 = vtanh.pop %v1088
    %v1090 = vmul.f32 %v1089, 0.5
    %v1091 = vadd.f32 %v1090, 0.5
    %v1092 = vmul.f32 %v1085, 0.5
    %v1093 = vtanh.pop %v1092
    %v1094 = vmul.f32 %v1093, 0.5
    %v1095 = vadd.f32 %v1094, 0.5
    %v1096 = vtanh.pop %v1086
    %v1097 = vmul.f32 %v1087, 0.5
    %v1098 = vtanh.pop %v1097
    %v1099 = vmul.f32 %v1098, 0.5
    %v1100 = vadd.f32 %v1099, 0.5
    %v1101 = vmul.f32 %v1095, %v994
    %v1102 = vmul.f32 %v1091, %v1096
    %v1103 = vadd.f32 %v1101, %v1102
    %v1104 = vtanh.pop %v1103
    %v1105 = vmul.f32 %v1100, %v1104
    %s1106 = smul.u32 6, 4
    %s1107 = smul.addr %s1106, 8
    %s1108 = scalar_lea.vmem [#allocation2], %s1107
    %v1109 = vld [vmem:[%s1108] sm:$0xff]
    %v1110 = vld [vmem:[%s1108 + $0x8] sm:$0xff]
    %v1111 = vld [vmem:[%s1108 + $0x10] sm:$0xff]
    %v1112 = vld [vmem:[%s1108 + $0x18] sm:$0xff]
    %1113 = vmatpush.msra.mxu0 %v448
    %1114 = vmatpush.msra.mxu0 %v444
    %1115 = vmatpush.msra.mxu0 %v440
    %1116 = vmatpush.msra.mxu0 %v436
    %1117 = vmatpush.msra.mxu0 %v432
    %1118 = vmatpush.msra.mxu0 %v428
    %1119 = vmatpush.msra.mxu0 %v424
    %1120 = vmatpush.msra.mxu0 %v420
    %1121 = vmatpush.msra.mxu0 %v416
    %1122 = vmatpush.msra.mxu0 %v412
    %1123 = vmatpush.msra.mxu0 %v408
    %1124 = vmatpush.msra.mxu0 %v404
    %1125 = vmatpush.msra.mxu0 %v400
    %1126 = vmatpush.msra.mxu0 %v396
    %1127 = vmatpush.msra.mxu0 %v392
    %1128 = vmatpush.msra.mxu0 %v388
    %1129 = vmatmul.f32.gmra.mxu0 %v1105
    %v1130 = vpop.f32.mrf.mxu0
    %v1131 = vadd.f32 0.0, %v1130
    %1132 = vdwg.mxu0
    %1133 = vmatpush.msra.mxu0 %v449
    %1134 = vmatpush.msra.mxu0 %v445
    %1135 = vmatpush.msra.mxu0 %v441
    %1136 = vmatpush.msra.mxu0 %v437
    %1137 = vmatpush.msra.mxu0 %v433
    %1138 = vmatpush.msra.mxu0 %v429
    %1139 = vmatpush.msra.mxu0 %v425
    %1140 = vmatpush.msra.mxu0 %v421
    %1141 = vmatpush.msra.mxu0 %v417
    %1142 = vmatpush.msra.mxu0 %v413
    %1143 = vmatpush.msra.mxu0 %v409
    %1144 = vmatpush.msra.mxu0 %v405
    %1145 = vmatpush.msra.mxu0 %v401
    %1146 = vmatpush.msra.mxu0 %v397
    %1147 = vmatpush.msra.mxu0 %v393
    %1148 = vmatpush.msra.mxu0 %v389
    %1149 = vmatmul.f32.gmra.mxu0 %v1105
    %v1150 = vpop.f32.mrf.mxu0
    %v1151 = vadd.f32 0.0, %v1150
    %1152 = vdwg.mxu0
    %1153 = vmatpush.msra.mxu0 %v450
    %1154 = vmatpush.msra.mxu0 %v446
    %1155 = vmatpush.msra.mxu0 %v442
    %1156 = vmatpush.msra.mxu0 %v438
    %1157 = vmatpush.msra.mxu0 %v434
    %1158 = vmatpush.msra.mxu0 %v430
    %1159 = vmatpush.msra.mxu0 %v426
    %1160 = vmatpush.msra.mxu0 %v422
    %1161 = vmatpush.msra.mxu0 %v418
    %1162 = vmatpush.msra.mxu0 %v414
    %1163 = vmatpush.msra.mxu0 %v410
    %1164 = vmatpush.msra.mxu0 %v406
    %1165 = vmatpush.msra.mxu0 %v402
    %1166 = vmatpush.msra.mxu0 %v398
    %1167 = vmatpush.msra.mxu0 %v394
    %1168 = vmatpush.msra.mxu0 %v390
    %1169 = vmatmul.f32.gmra.mxu0 %v1105
    %v1170 = vpop.f32.mrf.mxu0
    %v1171 = vadd.f32 0.0, %v1170
    %1172 = vdwg.mxu0
    %1173 = vmatpush.msra.mxu0 %v451
    %1174 = vmatpush.msra.mxu0 %v447
    %1175 = vmatpush.msra.mxu0 %v443
    %1176 = vmatpush.msra.mxu0 %v439
    %1177 = vmatpush.msra.mxu0 %v435
    %1178 = vmatpush.msra.mxu0 %v431
    %1179 = vmatpush.msra.mxu0 %v427
    %1180 = vmatpush.msra.mxu0 %v423
    %1181 = vmatpush.msra.mxu0 %v419
    %1182 = vmatpush.msra.mxu0 %v415
    %1183 = vmatpush.msra.mxu0 %v411
    %1184 = vmatpush.msra.mxu0 %v407
    %1185 = vmatpush.msra.mxu0 %v403
    %1186 = vmatpush.msra.mxu0 %v399
    %1187 = vmatpush.msra.mxu0 %v395
    %1188 = vmatpush.msra.mxu0 %v391
    %1189 = vmatmul.f32.gmra.mxu0 %v1105
    %v1190 = vpop.f32.mrf.mxu0
    %v1191 = vadd.f32 0.0, %v1190
    %1192 = vdwg.mxu0
    %v1193 = vadd.f32 %v1109, %v1131
    %v1194 = vadd.f32 %v1110, %v1151
    %v1195 = vadd.f32 %v1111, %v1171
    %v1196 = vadd.f32 %v1112, %v1191
    %v1197 = vmul.f32 %v1193, 0.5
    %v1198 = vtanh.pop %v1197
    %v1199 = vmul.f32 %v1198, 0.5
    %v1200 = vadd.f32 %v1199, 0.5
    %v1201 = vmul.f32 %v1194, 0.5
    %v1202 = vtanh.pop %v1201
    %v1203 = vmul.f32 %v1202, 0.5
    %v1204 = vadd.f32 %v1203, 0.5
    %v1205 = vtanh.pop %v1195
    %v1206 = vmul.f32 %v1196, 0.5
    %v1207 = vtanh.pop %v1206
    %v1208 = vmul.f32 %v1207, 0.5
    %v1209 = vadd.f32 %v1208, 0.5
    %v1210 = vmul.f32 %v1204, %v1103
    %v1211 = vmul.f32 %v1200, %v1205
    %v1212 = vadd.f32 %v1210, %v1211
    %v1213 = vtanh.pop %v1212
    %v1214 = vmul.f32 %v1209, %v1213
    %s1215 = smul.u32 7, 4
    %s1216 = smul.addr %s1215, 8
    %s1217 = scalar_lea.vmem [#allocation2], %s1216
    %v1218 = vld [vmem:[%s1217] sm:$0xff]
    %v1219 = vld [vmem:[%s1217 + $0x8] sm:$0xff]
    %v1220 = vld [vmem:[%s1217 + $0x10] sm:$0xff]
    %v1221 = vld [vmem:[%s1217 + $0x18] sm:$0xff]
    %1222 = vmatpush.msra.mxu0 %v448
    %1223 = vmatpush.msra.mxu0 %v444
    %1224 = vmatpush.msra.mxu0 %v440
    %1225 = vmatpush.msra.mxu0 %v436
    %1226 = vmatpush.msra.mxu0 %v432
    %1227 = vmatpush.msra.mxu0 %v428
    %1228 = vmatpush.msra.mxu0 %v424
    %1229 = vmatpush.msra.mxu0 %v420
    %1230 = vmatpush.msra.mxu0 %v416
    %1231 = vmatpush.msra.mxu0 %v412
    %1232 = vmatpush.msra.mxu0 %v408
    %1233 = vmatpush.msra.mxu0 %v404
    %1234 = vmatpush.msra.mxu0 %v400
    %1235 = vmatpush.msra.mxu0 %v396
    %1236 = vmatpush.msra.mxu0 %v392
    %1237 = vmatpush.msra.mxu0 %v388
    %1238 = vmatmul.f32.gmra.mxu0 %v1214
    %v1239 = vpop.f32.mrf.mxu0
    %v1240 = vadd.f32 0.0, %v1239
    %1241 = vdwg.mxu0
    %1242 = vmatpush.msra.mxu0 %v449
    %1243 = vmatpush.msra.mxu0 %v445
    %1244 = vmatpush.msra.mxu0 %v441
    %1245 = vmatpush.msra.mxu0 %v437
    %1246 = vmatpush.msra.mxu0 %v433
    %1247 = vmatpush.msra.mxu0 %v429
    %1248 = vmatpush.msra.mxu0 %v425
    %1249 = vmatpush.msra.mxu0 %v421
    %1250 = vmatpush.msra.mxu0 %v417
    %1251 = vmatpush.msra.mxu0 %v413
    %1252 = vmatpush.msra.mxu0 %v409
    %1253 = vmatpush.msra.mxu0 %v405
    %1254 = vmatpush.msra.mxu0 %v401
    %1255 = vmatpush.msra.mxu0 %v397
    %1256 = vmatpush.msra.mxu0 %v393
    %1257 = vmatpush.msra.mxu0 %v389
    %1258 = vmatmul.f32.gmra.mxu0 %v1214
    %v1259 = vpop.f32.mrf.mxu0
    %v1260 = vadd.f32 0.0, %v1259
    %1261 = vdwg.mxu0
    %1262 = vmatpush.msra.mxu0 %v450
    %1263 = vmatpush.msra.mxu0 %v446
    %1264 = vmatpush.msra.mxu0 %v442
    %1265 = vmatpush.msra.mxu0 %v438
    %1266 = vmatpush.msra.mxu0 %v434
    %1267 = vmatpush.msra.mxu0 %v430
    %1268 = vmatpush.msra.mxu0 %v426
    %1269 = vmatpush.msra.mxu0 %v422
    %1270 = vmatpush.msra.mxu0 %v418
    %1271 = vmatpush.msra.mxu0 %v414
    %1272 = vmatpush.msra.mxu0 %v410
    %1273 = vmatpush.msra.mxu0 %v406
    %1274 = vmatpush.msra.mxu0 %v402
    %1275 = vmatpush.msra.mxu0 %v398
    %1276 = vmatpush.msra.mxu0 %v394
    %1277 = vmatpush.msra.mxu0 %v390
    %1278 = vmatmul.f32.gmra.mxu0 %v1214
    %v1279 = vpop.f32.mrf.mxu0
    %v1280 = vadd.f32 0.0, %v1279
    %1281 = vdwg.mxu0
    %1282 = vmatpush.msra.mxu0 %v451
    %1283 = vmatpush.msra.mxu0 %v447
    %1284 = vmatpush.msra.mxu0 %v443
    %1285 = vmatpush.msra.mxu0 %v439
    %1286 = vmatpush.msra.mxu0 %v435
    %1287 = vmatpush.msra.mxu0 %v431
    %1288 = vmatpush.msra.mxu0 %v427
    %1289 = vmatpush.msra.mxu0 %v423
    %1290 = vmatpush.msra.mxu0 %v419
    %1291 = vmatpush.msra.mxu0 %v415
    %1292 = vmatpush.msra.mxu0 %v411
    %1293 = vmatpush.msra.mxu0 %v407
    %1294 = vmatpush.msra.mxu0 %v403
    %1295 = vmatpush.msra.mxu0 %v399
    %1296 = vmatpush.msra.mxu0 %v395
    %1297 = vmatpush.msra.mxu0 %v391
    %1298 = vmatmul.f32.gmra.mxu0 %v1214
    %v1299 = vpop.f32.mrf.mxu0
    %v1300 = vadd.f32 0.0, %v1299
    %1301 = vdwg.mxu0
    %v1302 = vadd.f32 %v1218, %v1240
    %v1303 = vadd.f32 %v1219, %v1260
    %v1304 = vadd.f32 %v1220, %v1280
    %v1305 = vadd.f32 %v1221, %v1300
    %v1306 = vmul.f32 %v1302, 0.5
    %v1307 = vtanh.pop %v1306
    %v1308 = vmul.f32 %v1307, 0.5
    %v1309 = vadd.f32 %v1308, 0.5
    %v1310 = vmul.f32 %v1303, 0.5
    %v1311 = vtanh.pop %v1310
    %v1312 = vmul.f32 %v1311, 0.5
    %v1313 = vadd.f32 %v1312, 0.5
    %v1314 = vtanh.pop %v1304
    %v1315 = vmul.f32 %v1305, 0.5
    %v1316 = vtanh.pop %v1315
    %v1317 = vmul.f32 %v1316, 0.5
    %v1318 = vadd.f32 %v1317, 0.5
    %v1319 = vmul.f32 %v1313, %v1212
    %v1320 = vmul.f32 %v1309, %v1314
    %v1321 = vadd.f32 %v1319, %v1320
    %v1322 = vtanh.pop %v1321
    %v1323 = vmul.f32 %v1318, %v1322
    %s1324 = scalar_lea.vmem [#allocation4], 56
    %v1325 = vld [vmem:[%s1324] sm:$0xff]
    %v1326 = vld [vmem:[#allocation9] sm:$0xff]
    %v1327 = vld [vmem:[#allocation9 + $0x8] sm:$0xff]
    %v1328 = vld [vmem:[#allocation9 + $0x10] sm:$0xff]
    %v1329 = vld [vmem:[#allocation9 + $0x18] sm:$0xff]
    %v1330 = vld [vmem:[#allocation9 + $0x20] sm:$0xff]
    %v1331 = vld [vmem:[#allocation9 + $0x28] sm:$0xff]
    %v1332 = vld [vmem:[#allocation9 + $0x30] sm:$0xff]
    %v1333 = vld [vmem:[#allocation9 + $0x38] sm:$0xff]
    %v1334 = vld [vmem:[#allocation9 + $0x40] sm:$0xff]
    %v1335 = vld [vmem:[#allocation9 + $0x48] sm:$0xff]
    %v1336 = vld [vmem:[#allocation9 + $0x50] sm:$0xff]
    %v1337 = vld [vmem:[#allocation9 + $0x58] sm:$0xff]
    %v1338 = vld [vmem:[#allocation9 + $0x60] sm:$0xff]
    %v1339 = vld [vmem:[#allocation9 + $0x68] sm:$0xff]
    %v1340 = vld [vmem:[#allocation9 + $0x70] sm:$0xff]
    %v1341 = vld [vmem:[#allocation9 + $0x78] sm:$0xff]
    %v1342 = vld [vmem:[#allocation9 + $0x80] sm:$0xff]
    %v1343 = vld [vmem:[#allocation9 + $0x88] sm:$0xff]
    %v1344 = vld [vmem:[#allocation9 + $0x90] sm:$0xff]
    %v1345 = vld [vmem:[#allocation9 + $0x98] sm:$0xff]
    %v1346 = vld [vmem:[#allocation9 + $0xa0] sm:$0xff]
    %v1347 = vld [vmem:[#allocation9 + $0xa8] sm:$0xff]
    %v1348 = vld [vmem:[#allocation9 + $0xb0] sm:$0xff]
    %v1349 = vld [vmem:[#allocation9 + $0xb8] sm:$0xff]
    %v1350 = vld [vmem:[#allocation9 + $0xc0] sm:$0xff]
    %v1351 = vld [vmem:[#allocation9 + $0xc8] sm:$0xff]
    %v1352 = vld [vmem:[#allocation9 + $0xd0] sm:$0xff]
    %v1353 = vld [vmem:[#allocation9 + $0xd8] sm:$0xff]
    %v1354 = vld [vmem:[#allocation9 + $0xe0] sm:$0xff]
    %v1355 = vld [vmem:[#allocation9 + $0xe8] sm:$0xff]
    %v1356 = vld [vmem:[#allocation9 + $0xf0] sm:$0xff]
    %v1357 = vld [vmem:[#allocation9 + $0xf8] sm:$0xff]
    %v1358 = vld [vmem:[#allocation9 + $0x100] sm:$0xff]
    %v1359 = vld [vmem:[#allocation9 + $0x108] sm:$0xff]
    %v1360 = vld [vmem:[#allocation9 + $0x110] sm:$0xff]
    %v1361 = vld [vmem:[#allocation9 + $0x118] sm:$0xff]
    %v1362 = vld [vmem:[#allocation9 + $0x120] sm:$0xff]
    %v1363 = vld [vmem:[#allocation9 + $0x128] sm:$0xff]
    %v1364 = vld [vmem:[#allocation9 + $0x130] sm:$0xff]
    %v1365 = vld [vmem:[#allocation9 + $0x138] sm:$0xff]
    %v1366 = vld [vmem:[#allocation9 + $0x140] sm:$0xff]
    %v1367 = vld [vmem:[#allocation9 + $0x148] sm:$0xff]
    %v1368 = vld [vmem:[#allocation9 + $0x150] sm:$0xff]
    %v1369 = vld [vmem:[#allocation9 + $0x158] sm:$0xff]
    %v1370 = vld [vmem:[#allocation9 + $0x160] sm:$0xff]
    %v1371 = vld [vmem:[#allocation9 + $0x168] sm:$0xff]
    %v1372 = vld [vmem:[#allocation9 + $0x170] sm:$0xff]
    %v1373 = vld [vmem:[#allocation9 + $0x178] sm:$0xff]
    %v1374 = vld [vmem:[#allocation11] sm:$0x7]
    %v1376 = vperm.slane %v1374, 0
    %v1377 = vperm.slane %v1374, 1
    %v1378 = vperm.slane %v1374, 2
    %1382 = vmatpush.msra.mxu0 %v1371
    %1383 = vmatpush.msra.mxu0 %v1368
    %1384 = vmatpush.msra.mxu0 %v1365
    %1385 = vmatpush.msra.mxu0 %v1362
    %1386 = vmatpush.msra.mxu0 %v1359
    %1387 = vmatpush.msra.mxu0 %v1356
    %1388 = vmatpush.msra.mxu0 %v1353
    %1389 = vmatpush.msra.mxu0 %v1350
    %1390 = vmatpush.msra.mxu0 %v1347
    %1391 = vmatpush.msra.mxu0 %v1344
    %1392 = vmatpush.msra.mxu0 %v1341
    %1393 = vmatpush.msra.mxu0 %v1338
    %1394 = vmatpush.msra.mxu0 %v1335
    %1395 = vmatpush.msra.mxu0 %v1332
    %1396 = vmatpush.msra.mxu0 %v1329
    %1397 = vmatpush.msra.mxu0 %v1326
    %1398 = vmatmul.f32.gmra.mxu0 %v1325
    %v1399 = vpop.f32.mrf.mxu0
    %v1400 = vadd.f32 %v1376, %v1399
    %1401 = vdwg.mxu0
    %1402 = vmatpush.msra.mxu0 %v1372
    %1403 = vmatpush.msra.mxu0 %v1369
    %1404 = vmatpush.msra.mxu0 %v1366
    %1405 = vmatpush.msra.mxu0 %v1363
    %1406 = vmatpush.msra.mxu0 %v1360
    %1407 = vmatpush.msra.mxu0 %v1357
    %1408 = vmatpush.msra.mxu0 %v1354
    %1409 = vmatpush.msra.mxu0 %v1351
    %1410 = vmatpush.msra.mxu0 %v1348
    %1411 = vmatpush.msra.mxu0 %v1345
    %1412 = vmatpush.msra.mxu0 %v1342
    %1413 = vmatpush.msra.mxu0 %v1339
    %1414 = vmatpush.msra.mxu0 %v1336
    %1415 = vmatpush.msra.mxu0 %v1333
    %1416 = vmatpush.msra.mxu0 %v1330
    %1417 = vmatpush.msra.mxu0 %v1327
    %1418 = vmatmul.f32.gmra.mxu0 %v1325
    %v1419 = vpop.f32.mrf.mxu0
    %v1420 = vadd.f32 %v1377, %v1419
    %1421 = vdwg.mxu0
    %1422 = vmatpush.msra.mxu0 %v1373
    %1423 = vmatpush.msra.mxu0 %v1370
    %1424 = vmatpush.msra.mxu0 %v1367
    %1425 = vmatpush.msra.mxu0 %v1364
    %1426 = vmatpush.msra.mxu0 %v1361
    %1427 = vmatpush.msra.mxu0 %v1358
    %1428 = vmatpush.msra.mxu0 %v1355
    %1429 = vmatpush.msra.mxu0 %v1352
    %1430 = vmatpush.msra.mxu0 %v1349
    %1431 = vmatpush.msra.mxu0 %v1346
    %1432 = vmatpush.msra.mxu0 %v1343
    %1433 = vmatpush.msra.mxu0 %v1340
    %1434 = vmatpush.msra.mxu0 %v1337
    %1435 = vmatpush.msra.mxu0 %v1334
    %1436 = vmatpush.msra.mxu0 %v1331
    %1437 = vmatpush.msra.mxu0 %v1328
    %1438 = vmatmul.f32.gmra.mxu0 %v1325
    %v1439 = vpop.f32.mrf.mxu0
    %v1440 = vadd.f32 %v1378, %v1439
    %1441 = vdwg.mxu0
    %v1442 = vmul.f32 %v1400, 0.5
    %v1443 = vtanh.pop %v1442
    %v1444 = vmul.f32 %v1443, 0.5
    %v1445 = vadd.f32 %v1444, 0.5
    %v1446 = vtanh.pop %v1420
    %v1447 = vmul.f32 %v1440, 0.5
    %v1448 = vtanh.pop %v1447
    %v1449 = vmul.f32 %v1448, 0.5
    %v1450 = vadd.f32 %v1449, 0.5
    %v1451 = vmul.f32 %v1445, %v1446
    %v1452 = vtanh.pop %v1451
    %v1453 = vmul.f32 %v1450, %v1452
    %v1454 = vld [vmem:[%s6] sm:$0x1]
    %v1456 = vperm.slane %v1454, 0
    %v1458 = vmul.f32 %v1323, %v1456
    %1459 = vadd.xlane.f32.xlu0 %v1458
    %v1460 = vpop.xlane.xlu0 %1459
    %v1461 = vld [vmem:[%s7] sm:$0x1]
    %v1463 = vperm.slane %v1461, 0
    %v1465 = vmul.f32 %v1453, %v1463
    %1466 = vadd.xlane.f32.xlu0 %v1465
    %v1467 = vpop.xlane.xlu0 %1466
    %v1468 = vadd.f32 %v1460, %v1467
    %v1469 = vld [vmem:[#allocation3] sm:$0x1]
    %v1471 = vperm.slane %v1469, 0
    %v1473 = vadd.f32 %v1468, %v1471
    %v1474 = vmul.f32 %v1473, 0.5
    %v1475 = vtanh.pop %v1474
    %v1476 = vmul.f32 %v1475, 0.5
    %v1477 = vadd.f32 %v1476, 0.5
    %vm1478 = vcmask 7168
    %1479 = vst.msk [vmem:[%s9] sm:$0xff] %vm1478, %v1477
    // Predicated region
    $region58: #{tpu_custom_call.1} parent=1 // pred_check
      _
    $region59: #{tpu_custom_call.1} parent=1 // pred_check_branch
      %1481 = sbr.rel (0) target = $region61
    $region60: #{tpu_custom_call.1} parent=1 // pred_region
      _
    $region61: #{tpu_custom_call.1} parent=1 // pred_fallthru
      _
    // Predicated region
    $region62: #{tpu_custom_call.1} parent=1 // pred_check
      _
    $region63: #{tpu_custom_call.1} parent=1 // pred_check_branch
      %1483 = sbr.rel (0) target = $region65
    $region64: #{tpu_custom_call.1} parent=1 // pred_region
      _
    $region65: #{tpu_custom_call.1} parent=1 // pred_fallthru
      _
    %1484 = vsyncpa [#allocation5], 1
    %1485 = vsyncpa [#allocation7], 1
    %1486 = vsyncpa [#allocation10], 1

</llo_original>
